<compile_context>
chip_gen: v6e
topology: v6e:2x2x1
jax: 0.10.0
libtpu: 0.0.40
codegen_flags: <defaults>
</compile_context>

<pallas_src>
import functools

import numpy as np
import jax
import jax.numpy as jnp
from jax.experimental import pallas as pl
from jax.experimental.pallas import tpu as pltpu


# ----------------------------------------------------------------------------
# fused CBAM kernel: channel attention + spatial attention + add
# ----------------------------------------------------------------------------
def _cbam_kernel(x_ref, w1_ref, b1_ref, w2_ref, b2_ref, wmax_ref, wmean_ref,
                 o_ref, *, H, W, K):
    P = K // 2
    HW = H * W
    x = x_ref[...]                                      # (1, C, HW) f32

    # ---- channel attention: avg & max spatial pools share one MLP pass ----
    avg = jnp.mean(x, axis=2)                           # (1, C)
    mx = jnp.max(x, axis=2)                             # (1, C)
    pooled = jnp.concatenate([avg, mx], axis=0)         # (2, C)
    h = jnp.dot(pooled, w1_ref[...],
                preferred_element_type=jnp.float32) + b1_ref[...]
    h = jnp.maximum(h, 0.0)                             # ReLU
    att = jnp.dot(h, w2_ref[...],
                  preferred_element_type=jnp.float32) + b2_ref[...]   # (2, C)
    ca = jax.nn.sigmoid(att[0:1, :] + att[1:2, :])      # (1, C)
    channel = x * ca[:, :, None]                        # (1, C, HW)

    # ---- spatial attention: ChannelPool + 7x7 conv (pad=3) + sigmoid ----
    cmax = jnp.max(x, axis=1)                           # (1, HW)  ChannelPool[0]
    cmean = jnp.mean(x, axis=1)                         # (1, HW)  ChannelPool[1]

    PAD = P * W + P                                     # max |flat shift| = 3*W+3
    z = jnp.zeros((1, PAD), jnp.float32)
    pmax = jnp.concatenate([z, cmax, z], axis=1)        # (1, HW + 2*PAD)
    pmean = jnp.concatenate([z, cmean, z], axis=1)

    wmax = wmax_ref[...]                                # (K*K, HW)  mask * w[0,0]
    wmean = wmean_ref[...]                              # (K*K, HW)  mask * w[0,1]

    # out[p] = sum_{dy,dx} valid(p,dy,dx) * ( w0[dy,dx]*cmax[p+s] + w1[dy,dx]*cmean[p+s] )
    # with s = (dy-3)*W + (dx-3); boundary masks are pre-folded into wmax/wmean.
    sconv = jnp.zeros((1, HW), jnp.float32)
    for dy in range(K):
        for dx in range(K):
            t = dy * K + dx
            s = PAD + (dy - P) * W + (dx - P)
            sconv = sconv + (wmax[t:t + 1, :] * pmax[:, s:s + HW]
                             + wmean[t:t + 1, :] * pmean[:, s:s + HW])

    spatial = x * jax.nn.sigmoid(sconv)[:, None, :]     # (1, C, HW)

    o_ref[...] = channel + spatial


# ----------------------------------------------------------------------------
# static (numpy) zero-padding validity masks for the 7x7 conv on a flat H*W axis
# ----------------------------------------------------------------------------
def _conv_valid_masks(H, W, K):
    P = K // 2
    HW = H * W
    r = np.arange(HW) // W
    c = np.arange(HW) % W
    masks = np.zeros((K * K, HW), np.float32)
    for dy in range(K):
        for dx in range(K):
            oy, ox = dy - P, dx - P
            ok = (r + oy >= 0) & (r + oy < H) & (c + ox >= 0) & (c + ox < W)
            masks[dy * K + dx] = ok
    return masks


# ----------------------------------------------------------------------------
# wrapper: CBAM forward
# ----------------------------------------------------------------------------
def cbam_forward(x, params):
    """x: (N, C, H, W) f32.  params: ca_w1 (C,Cr), ca_b1 (Cr,), ca_w2 (Cr,C),
    ca_b2 (C,), sa_w (1,2,7,7)."""
    N, C, H, W = x.shape
    HW = H * W
    K = 7
    Cr = params["ca_w1"].shape[1]

    x_flat = x.reshape(N, C, HW)                        # HW on the lane axis
    b1 = params["ca_b1"].reshape(1, Cr)
    b2 = params["ca_b2"].reshape(1, C)

    # fold the zero-padding boundary masks into the 7x7 conv weights (tiny XLA op)
    masks = jnp.asarray(_conv_valid_masks(H, W, K))     # (49, HW) of {0,1}
    wflat = params["sa_w"].reshape(2, K * K)            # ch0 = max, ch1 = mean
    wmax = wflat[0][:, None] * masks                    # (49, HW)
    wmean = wflat[1][:, None] * masks                   # (49, HW)

    kernel = functools.partial(_cbam_kernel, H=H, W=W, K=K)
    out = pl.pallas_call(
        kernel,
        grid=(N,),
        in_specs=[
            pl.BlockSpec((1, C, HW), lambda n: (n, 0, 0)),
            pl.BlockSpec((C, Cr), lambda n: (0, 0)),
            pl.BlockSpec((1, Cr), lambda n: (0, 0)),
            pl.BlockSpec((Cr, C), lambda n: (0, 0)),
            pl.BlockSpec((1, C), lambda n: (0, 0)),
            pl.BlockSpec((K * K, HW), lambda n: (0, 0)),
            pl.BlockSpec((K * K, HW), lambda n: (0, 0)),
        ],
        out_specs=pl.BlockSpec((1, C, HW), lambda n: (n, 0, 0)),
        out_shape=jax.ShapeDtypeStruct((N, C, HW), jnp.float32),
        compiler_params=pltpu.CompilerParams(
            dimension_semantics=("parallel",)),          # both TCs on v7x
    )(x_flat, params["ca_w1"], b1, params["ca_w2"], b2, wmax, wmean)

    return out.reshape(N, C, H, W)


# ----------------------------------------------------------------------------
# pure-JAX reference (XLA) for correctness checking
# ----------------------------------------------------------------------------
def _cbam_reference(x, p):
    N, C, H, W = x.shape
    xf = x.reshape(N, C, H * W)
    avg = jnp.mean(xf, axis=2)
    mx = jnp.max(xf, axis=2)

    def mlp(v):
        h = jnp.maximum(
            jnp.dot(v, p["ca_w1"], precision=jax.lax.Precision.HIGHEST)
            + p["ca_b1"], 0.0)
        return jnp.dot(h, p["ca_w2"],
                       precision=jax.lax.Precision.HIGHEST) + p["ca_b2"]

    scale_c = jax.nn.sigmoid(mlp(avg) + mlp(mx))
    channel = x * scale_c[:, :, None, None]

    pooled = jnp.concatenate(
        [jnp.max(x, axis=1, keepdims=True),
         jnp.mean(x, axis=1, keepdims=True)], axis=1)
    sconv = jax.lax.conv_general_dilated(
        pooled, p["sa_w"], window_strides=(1, 1), padding=((3, 3), (3, 3)),
        dimension_numbers=("NCHW", "OIHW", "NCHW"),
        precision=jax.lax.Precision.HIGHEST)
    spatial = x * jax.nn.sigmoid(sconv)
    return channel + spatial


# ----------------------------------------------------------------------------
if __name__ == "__main__":
    key = jax.random.PRNGKey(0)
    kx, k1, k2, k3, k4, k5 = jax.random.split(key, 6)

    N, C, H, W = 2, 32, 16, 16          # gate_channel=32, reduction_ratio=8
    R = 8
    Cr = C // R

    x = jax.random.normal(kx, (N, C, H, W), jnp.float32)
    params = {
        "ca_w1": jax.random.normal(k1, (C, Cr), jnp.float32) * (1.0 / C ** 0.5),
        "ca_b1": jax.random.normal(k2, (Cr,), jnp.float32) * 0.02,
        "ca_w2": jax.random.normal(k3, (Cr, C), jnp.float32) * (1.0 / Cr ** 0.5),
        "ca_b2": jax.random.normal(k4, (C,), jnp.float32) * 0.02,
        "sa_w": jax.random.normal(k5, (1, 2, 7, 7), jnp.float32)
                * (1.0 / (2 * 7 * 7) ** 0.5),
    }

    fwd = jax.jit(cbam_forward)
    out = jax.block_until_ready(fwd(x, params))
    assert out.shape == (N, C, H, W), out.shape
    assert bool(jnp.all(jnp.isfinite(out)))

    ref = _cbam_reference(x, params)
    err = float(jnp.max(jnp.abs(out - ref)))
    assert err < 5e-3, f"max abs error vs reference: {err}"

    print("KERNEL_OK")
</pallas_src>

<mosaic_0001>
module attributes {stable_mosaic.version = 11 : i64} {
  func.func @_cbam_kernel(%arg0: i32, %arg1: memref<1x32x256xf32, #tpu.memory_space<vmem>>, %arg2: memref<32x4xf32, #tpu.memory_space<vmem>>, %arg3: memref<1x4xf32, #tpu.memory_space<vmem>>, %arg4: memref<4x32xf32, #tpu.memory_space<vmem>>, %arg5: memref<1x32xf32, #tpu.memory_space<vmem>>, %arg6: memref<49x256xf32, #tpu.memory_space<vmem>>, %arg7: memref<49x256xf32, #tpu.memory_space<vmem>>, %arg8: memref<1x32x256xf32, #tpu.memory_space<vmem>>) attributes {dimension_semantics = [#tpu.dimension_semantics<parallel>], iteration_bounds = array<i64: 2>, scalar_prefetch = 0 : i64, scratch_operands = 0 : i64, tpu.core_type = #tpu.core_type<tc>, window_params = [{transform_indices = @transform_0, window_bounds = array<i64: 1, 32, 256>}, {pipeline_mode = #tpu.pipeline_mode<synchronous>, transform_indices = @transform_1, window_bounds = array<i64: 32, 4>}, {pipeline_mode = #tpu.pipeline_mode<synchronous>, transform_indices = @transform_2, window_bounds = array<i64: 1, 4>}, {pipeline_mode = #tpu.pipeline_mode<synchronous>, transform_indices = @transform_3, window_bounds = array<i64: 4, 32>}, {pipeline_mode = #tpu.pipeline_mode<synchronous>, transform_indices = @transform_4, window_bounds = array<i64: 1, 32>}, {pipeline_mode = #tpu.pipeline_mode<synchronous>, transform_indices = @transform_5, window_bounds = array<i64: 49, 256>}, {pipeline_mode = #tpu.pipeline_mode<synchronous>, transform_indices = @transform_6, window_bounds = array<i64: 49, 256>}, {transform_indices = @transform_7, window_bounds = array<i64: 1, 32, 256>}]} {
    %c0 = arith.constant 0 : index
    %c0_0 = arith.constant 0 : index
    %c0_1 = arith.constant 0 : index
    %0 = vector.load %arg1[%c0, %c0_0, %c0_1] : memref<1x32x256xf32, #tpu.memory_space<vmem>>, vector<1x32x256xf32>
    %cst = arith.constant dense<0.000000e+00> : vector<1x32xf32>
    %1 = vector.multi_reduction <add>, %0, %cst [2] : vector<1x32x256xf32> to vector<1x32xf32>
    %cst_2 = arith.constant 2.560000e+02 : f32
    %2 = vector.broadcast %cst_2 : f32 to vector<1x32xf32>
    %3 = arith.divf %1, %2 : vector<1x32xf32>
    %cst_3 = arith.constant dense<0xFF800000> : vector<1x32xf32>
    %4 = vector.multi_reduction <maximumf>, %0, %cst_3 [2] : vector<1x32x256xf32> to vector<1x32xf32>
    %5 = tpu.concatenate %3, %4 in 0 : vector<1x32xf32>, vector<1x32xf32> -> vector<2x32xf32>
    %c0_4 = arith.constant 0 : index
    %c0_5 = arith.constant 0 : index
    %6 = vector.load %arg2[%c0_4, %c0_5] : memref<32x4xf32, #tpu.memory_space<vmem>>, vector<32x4xf32>
    %cst_6 = arith.constant dense<0.000000e+00> : vector<2x4xf32>
    %7 = tpu.matmul %5, %6, %cst_6 {dimension_numbers = #tpu.dot_dimension_numbers<[1], [0], [0], [1], [0, 0, 1, 1], [], []>} : vector<2x32xf32>, vector<32x4xf32>, vector<2x4xf32> -> vector<2x4xf32>
    %c0_7 = arith.constant 0 : index
    %c0_8 = arith.constant 0 : index
    %8 = vector.load %arg3[%c0_7, %c0_8] : memref<1x4xf32, #tpu.memory_space<vmem>>, vector<1x4xf32>
    %9 = vector.broadcast %8 : vector<1x4xf32> to vector<2x4xf32>
    %10 = arith.addf %7, %9 : vector<2x4xf32>
    %cst_9 = arith.constant 0.000000e+00 : f32
    %11 = vector.broadcast %cst_9 : f32 to vector<2x4xf32>
    %12 = arith.maximumf %10, %11 : vector<2x4xf32>
    %c0_10 = arith.constant 0 : index
    %c0_11 = arith.constant 0 : index
    %13 = vector.load %arg4[%c0_10, %c0_11] : memref<4x32xf32, #tpu.memory_space<vmem>>, vector<4x32xf32>
    %cst_12 = arith.constant dense<0.000000e+00> : vector<2x32xf32>
    %14 = tpu.matmul %12, %13, %cst_12 {dimension_numbers = #tpu.dot_dimension_numbers<[1], [0], [0], [1], [0, 0, 1, 1], [], []>} : vector<2x4xf32>, vector<4x32xf32>, vector<2x32xf32> -> vector<2x32xf32>
    %c0_13 = arith.constant 0 : index
    %c0_14 = arith.constant 0 : index
    %15 = vector.load %arg5[%c0_13, %c0_14] : memref<1x32xf32, #tpu.memory_space<vmem>>, vector<1x32xf32>
    %16 = vector.broadcast %15 : vector<1x32xf32> to vector<2x32xf32>
    %17 = arith.addf %14, %16 : vector<2x32xf32>
    %18 = vector.extract_strided_slice %17 {offsets = [0, 0], sizes = [1, 32], strides = [1, 1]} : vector<2x32xf32> to vector<1x32xf32>
    %19 = vector.extract_strided_slice %17 {offsets = [1, 0], sizes = [1, 32], strides = [1, 1]} : vector<2x32xf32> to vector<1x32xf32>
    %20 = arith.addf %18, %19 : vector<1x32xf32>
    %21 = arith.negf %20 : vector<1x32xf32>
    %22 = math.exp %21 : vector<1x32xf32>
    %cst_15 = arith.constant 1.000000e+00 : f32
    %23 = vector.broadcast %cst_15 : f32 to vector<1x32xf32>
    %24 = arith.addf %23, %22 : vector<1x32xf32>
    %25 = arith.divf %23, %24 : vector<1x32xf32>
    %26 = vector.shape_cast %25 : vector<1x32xf32> to vector<1x32x1xf32>
    %27 = vector.broadcast %26 : vector<1x32x1xf32> to vector<1x32x256xf32>
    %28 = arith.mulf %0, %27 : vector<1x32x256xf32>
    %cst_16 = arith.constant dense<0xFF800000> : vector<1x256xf32>
    %29 = vector.multi_reduction <maximumf>, %0, %cst_16 [1] : vector<1x32x256xf32> to vector<1x256xf32>
    %cst_17 = arith.constant dense<0.000000e+00> : vector<1x256xf32>
    %30 = vector.multi_reduction <add>, %0, %cst_17 [1] : vector<1x32x256xf32> to vector<1x256xf32>
    %cst_18 = arith.constant 3.200000e+01 : f32
    %31 = vector.broadcast %cst_18 : f32 to vector<1x256xf32>
    %32 = arith.divf %30, %31 : vector<1x256xf32>
    %cst_19 = arith.constant 0.000000e+00 : f32
    %33 = vector.broadcast %cst_19 : f32 to vector<1x51xf32>
    %34 = tpu.concatenate %33, %29, %33 in 1 : vector<1x51xf32>, vector<1x256xf32>, vector<1x51xf32> -> vector<1x358xf32>
    %35 = tpu.concatenate %33, %32, %33 in 1 : vector<1x51xf32>, vector<1x256xf32>, vector<1x51xf32> -> vector<1x358xf32>
    %c0_20 = arith.constant 0 : index
    %c0_21 = arith.constant 0 : index
    %36 = vector.load %arg6[%c0_20, %c0_21] : memref<49x256xf32, #tpu.memory_space<vmem>>, vector<49x256xf32>
    %c0_22 = arith.constant 0 : index
    %c0_23 = arith.constant 0 : index
    %37 = vector.load %arg7[%c0_22, %c0_23] : memref<49x256xf32, #tpu.memory_space<vmem>>, vector<49x256xf32>
    %cst_24 = arith.constant 0.000000e+00 : f32
    %38 = vector.broadcast %cst_24 : f32 to vector<1x256xf32>
    %39 = vector.extract_strided_slice %36 {offsets = [0, 0], sizes = [1, 256], strides = [1, 1]} : vector<49x256xf32> to vector<1x256xf32>
    %40 = vector.extract_strided_slice %34 {offsets = [0, 0], sizes = [1, 256], strides = [1, 1]} : vector<1x358xf32> to vector<1x256xf32>
    %41 = arith.mulf %39, %40 : vector<1x256xf32>
    %42 = vector.extract_strided_slice %37 {offsets = [0, 0], sizes = [1, 256], strides = [1, 1]} : vector<49x256xf32> to vector<1x256xf32>
    %43 = vector.extract_strided_slice %35 {offsets = [0, 0], sizes = [1, 256], strides = [1, 1]} : vector<1x358xf32> to vector<1x256xf32>
    %44 = arith.mulf %42, %43 : vector<1x256xf32>
    %45 = arith.addf %41, %44 : vector<1x256xf32>
    %46 = arith.addf %38, %45 : vector<1x256xf32>
    %47 = vector.extract_strided_slice %36 {offsets = [1, 0], sizes = [1, 256], strides = [1, 1]} : vector<49x256xf32> to vector<1x256xf32>
    %48 = vector.extract_strided_slice %34 {offsets = [0, 1], sizes = [1, 256], strides = [1, 1]} : vector<1x358xf32> to vector<1x256xf32>
    %49 = arith.mulf %47, %48 : vector<1x256xf32>
    %50 = vector.extract_strided_slice %37 {offsets = [1, 0], sizes = [1, 256], strides = [1, 1]} : vector<49x256xf32> to vector<1x256xf32>
    %51 = vector.extract_strided_slice %35 {offsets = [0, 1], sizes = [1, 256], strides = [1, 1]} : vector<1x358xf32> to vector<1x256xf32>
    %52 = arith.mulf %50, %51 : vector<1x256xf32>
    %53 = arith.addf %49, %52 : vector<1x256xf32>
    %54 = arith.addf %46, %53 : vector<1x256xf32>
    %55 = vector.extract_strided_slice %36 {offsets = [2, 0], sizes = [1, 256], strides = [1, 1]} : vector<49x256xf32> to vector<1x256xf32>
    %56 = vector.extract_strided_slice %34 {offsets = [0, 2], sizes = [1, 256], strides = [1, 1]} : vector<1x358xf32> to vector<1x256xf32>
    %57 = arith.mulf %55, %56 : vector<1x256xf32>
    %58 = vector.extract_strided_slice %37 {offsets = [2, 0], sizes = [1, 256], strides = [1, 1]} : vector<49x256xf32> to vector<1x256xf32>
    %59 = vector.extract_strided_slice %35 {offsets = [0, 2], sizes = [1, 256], strides = [1, 1]} : vector<1x358xf32> to vector<1x256xf32>
    %60 = arith.mulf %58, %59 : vector<1x256xf32>
    %61 = arith.addf %57, %60 : vector<1x256xf32>
    %62 = arith.addf %54, %61 : vector<1x256xf32>
    %63 = vector.extract_strided_slice %36 {offsets = [3, 0], sizes = [1, 256], strides = [1, 1]} : vector<49x256xf32> to vector<1x256xf32>
    %64 = vector.extract_strided_slice %34 {offsets = [0, 3], sizes = [1, 256], strides = [1, 1]} : vector<1x358xf32> to vector<1x256xf32>
    %65 = arith.mulf %63, %64 : vector<1x256xf32>
    %66 = vector.extract_strided_slice %37 {offsets = [3, 0], sizes = [1, 256], strides = [1, 1]} : vector<49x256xf32> to vector<1x256xf32>
    %67 = vector.extract_strided_slice %35 {offsets = [0, 3], sizes = [1, 256], strides = [1, 1]} : vector<1x358xf32> to vector<1x256xf32>
    %68 = arith.mulf %66, %67 : vector<1x256xf32>
    %69 = arith.addf %65, %68 : vector<1x256xf32>
    %70 = arith.addf %62, %69 : vector<1x256xf32>
    %71 = vector.extract_strided_slice %36 {offsets = [4, 0], sizes = [1, 256], strides = [1, 1]} : vector<49x256xf32> to vector<1x256xf32>
    %72 = vector.extract_strided_slice %34 {offsets = [0, 4], sizes = [1, 256], strides = [1, 1]} : vector<1x358xf32> to vector<1x256xf32>
    %73 = arith.mulf %71, %72 : vector<1x256xf32>
    %74 = vector.extract_strided_slice %37 {offsets = [4, 0], sizes = [1, 256], strides = [1, 1]} : vector<49x256xf32> to vector<1x256xf32>
    %75 = vector.extract_strided_slice %35 {offsets = [0, 4], sizes = [1, 256], strides = [1, 1]} : vector<1x358xf32> to vector<1x256xf32>
    %76 = arith.mulf %74, %75 : vector<1x256xf32>
    %77 = arith.addf %73, %76 : vector<1x256xf32>
    %78 = arith.addf %70, %77 : vector<1x256xf32>
    %79 = vector.extract_strided_slice %36 {offsets = [5, 0], sizes = [1, 256], strides = [1, 1]} : vector<49x256xf32> to vector<1x256xf32>
    %80 = vector.extract_strided_slice %34 {offsets = [0, 5], sizes = [1, 256], strides = [1, 1]} : vector<1x358xf32> to vector<1x256xf32>
    %81 = arith.mulf %79, %80 : vector<1x256xf32>
    %82 = vector.extract_strided_slice %37 {offsets = [5, 0], sizes = [1, 256], strides = [1, 1]} : vector<49x256xf32> to vector<1x256xf32>
    %83 = vector.extract_strided_slice %35 {offsets = [0, 5], sizes = [1, 256], strides = [1, 1]} : vector<1x358xf32> to vector<1x256xf32>
    %84 = arith.mulf %82, %83 : vector<1x256xf32>
    %85 = arith.addf %81, %84 : vector<1x256xf32>
    %86 = arith.addf %78, %85 : vector<1x256xf32>
    %87 = vector.extract_strided_slice %36 {offsets = [6, 0], sizes = [1, 256], strides = [1, 1]} : vector<49x256xf32> to vector<1x256xf32>
    %88 = vector.extract_strided_slice %34 {offsets = [0, 6], sizes = [1, 256], strides = [1, 1]} : vector<1x358xf32> to vector<1x256xf32>
    %89 = arith.mulf %87, %88 : vector<1x256xf32>
    %90 = vector.extract_strided_slice %37 {offsets = [6, 0], sizes = [1, 256], strides = [1, 1]} : vector<49x256xf32> to vector<1x256xf32>
    %91 = vector.extract_strided_slice %35 {offsets = [0, 6], sizes = [1, 256], strides = [1, 1]} : vector<1x358xf32> to vector<1x256xf32>
    %92 = arith.mulf %90, %91 : vector<1x256xf32>
    %93 = arith.addf %89, %92 : vector<1x256xf32>
    %94 = arith.addf %86, %93 : vector<1x256xf32>
    %95 = vector.extract_strided_slice %36 {offsets = [7, 0], sizes = [1, 256], strides = [1, 1]} : vector<49x256xf32> to vector<1x256xf32>
    %96 = vector.extract_strided_slice %34 {offsets = [0, 16], sizes = [1, 256], strides = [1, 1]} : vector<1x358xf32> to vector<1x256xf32>
    %97 = arith.mulf %95, %96 : vector<1x256xf32>
    %98 = vector.extract_strided_slice %37 {offsets = [7, 0], sizes = [1, 256], strides = [1, 1]} : vector<49x256xf32> to vector<1x256xf32>
    %99 = vector.extract_strided_slice %35 {offsets = [0, 16], sizes = [1, 256], strides = [1, 1]} : vector<1x358xf32> to vector<1x256xf32>
    %100 = arith.mulf %98, %99 : vector<1x256xf32>
    %101 = arith.addf %97, %100 : vector<1x256xf32>
    %102 = arith.addf %94, %101 : vector<1x256xf32>
    %103 = vector.extract_strided_slice %36 {offsets = [8, 0], sizes = [1, 256], strides = [1, 1]} : vector<49x256xf32> to vector<1x256xf32>
    %104 = vector.extract_strided_slice %34 {offsets = [0, 17], sizes = [1, 256], strides = [1, 1]} : vector<1x358xf32> to vector<1x256xf32>
    %105 = arith.mulf %103, %104 : vector<1x256xf32>
    %106 = vector.extract_strided_slice %37 {offsets = [8, 0], sizes = [1, 256], strides = [1, 1]} : vector<49x256xf32> to vector<1x256xf32>
    %107 = vector.extract_strided_slice %35 {offsets = [0, 17], sizes = [1, 256], strides = [1, 1]} : vector<1x358xf32> to vector<1x256xf32>
    %108 = arith.mulf %106, %107 : vector<1x256xf32>
    %109 = arith.addf %105, %108 : vector<1x256xf32>
    %110 = arith.addf %102, %109 : vector<1x256xf32>
    %111 = vector.extract_strided_slice %36 {offsets = [9, 0], sizes = [1, 256], strides = [1, 1]} : vector<49x256xf32> to vector<1x256xf32>
    %112 = vector.extract_strided_slice %34 {offsets = [0, 18], sizes = [1, 256], strides = [1, 1]} : vector<1x358xf32> to vector<1x256xf32>
    %113 = arith.mulf %111, %112 : vector<1x256xf32>
    %114 = vector.extract_strided_slice %37 {offsets = [9, 0], sizes = [1, 256], strides = [1, 1]} : vector<49x256xf32> to vector<1x256xf32>
    %115 = vector.extract_strided_slice %35 {offsets = [0, 18], sizes = [1, 256], strides = [1, 1]} : vector<1x358xf32> to vector<1x256xf32>
    %116 = arith.mulf %114, %115 : vector<1x256xf32>
    %117 = arith.addf %113, %116 : vector<1x256xf32>
    %118 = arith.addf %110, %117 : vector<1x256xf32>
    %119 = vector.extract_strided_slice %36 {offsets = [10, 0], sizes = [1, 256], strides = [1, 1]} : vector<49x256xf32> to vector<1x256xf32>
    %120 = vector.extract_strided_slice %34 {offsets = [0, 19], sizes = [1, 256], strides = [1, 1]} : vector<1x358xf32> to vector<1x256xf32>
    %121 = arith.mulf %119, %120 : vector<1x256xf32>
    %122 = vector.extract_strided_slice %37 {offsets = [10, 0], sizes = [1, 256], strides = [1, 1]} : vector<49x256xf32> to vector<1x256xf32>
    %123 = vector.extract_strided_slice %35 {offsets = [0, 19], sizes = [1, 256], strides = [1, 1]} : vector<1x358xf32> to vector<1x256xf32>
    %124 = arith.mulf %122, %123 : vector<1x256xf32>
    %125 = arith.addf %121, %124 : vector<1x256xf32>
    %126 = arith.addf %118, %125 : vector<1x256xf32>
    %127 = vector.extract_strided_slice %36 {offsets = [11, 0], sizes = [1, 256], strides = [1, 1]} : vector<49x256xf32> to vector<1x256xf32>
    %128 = vector.extract_strided_slice %34 {offsets = [0, 20], sizes = [1, 256], strides = [1, 1]} : vector<1x358xf32> to vector<1x256xf32>
    %129 = arith.mulf %127, %128 : vector<1x256xf32>
    %130 = vector.extract_strided_slice %37 {offsets = [11, 0], sizes = [1, 256], strides = [1, 1]} : vector<49x256xf32> to vector<1x256xf32>
    %131 = vector.extract_strided_slice %35 {offsets = [0, 20], sizes = [1, 256], strides = [1, 1]} : vector<1x358xf32> to vector<1x256xf32>
    %132 = arith.mulf %130, %131 : vector<1x256xf32>
    %133 = arith.addf %129, %132 : vector<1x256xf32>
    %134 = arith.addf %126, %133 : vector<1x256xf32>
    %135 = vector.extract_strided_slice %36 {offsets = [12, 0], sizes = [1, 256], strides = [1, 1]} : vector<49x256xf32> to vector<1x256xf32>
    %136 = vector.extract_strided_slice %34 {offsets = [0, 21], sizes = [1, 256], strides = [1, 1]} : vector<1x358xf32> to vector<1x256xf32>
    %137 = arith.mulf %135, %136 : vector<1x256xf32>
    %138 = vector.extract_strided_slice %37 {offsets = [12, 0], sizes = [1, 256], strides = [1, 1]} : vector<49x256xf32> to vector<1x256xf32>
    %139 = vector.extract_strided_slice %35 {offsets = [0, 21], sizes = [1, 256], strides = [1, 1]} : vector<1x358xf32> to vector<1x256xf32>
    %140 = arith.mulf %138, %139 : vector<1x256xf32>
    %141 = arith.addf %137, %140 : vector<1x256xf32>
    %142 = arith.addf %134, %141 : vector<1x256xf32>
    %143 = vector.extract_strided_slice %36 {offsets = [13, 0], sizes = [1, 256], strides = [1, 1]} : vector<49x256xf32> to vector<1x256xf32>
    %144 = vector.extract_strided_slice %34 {offsets = [0, 22], sizes = [1, 256], strides = [1, 1]} : vector<1x358xf32> to vector<1x256xf32>
    %145 = arith.mulf %143, %144 : vector<1x256xf32>
    %146 = vector.extract_strided_slice %37 {offsets = [13, 0], sizes = [1, 256], strides = [1, 1]} : vector<49x256xf32> to vector<1x256xf32>
    %147 = vector.extract_strided_slice %35 {offsets = [0, 22], sizes = [1, 256], strides = [1, 1]} : vector<1x358xf32> to vector<1x256xf32>
    %148 = arith.mulf %146, %147 : vector<1x256xf32>
    %149 = arith.addf %145, %148 : vector<1x256xf32>
    %150 = arith.addf %142, %149 : vector<1x256xf32>
    %151 = vector.extract_strided_slice %36 {offsets = [14, 0], sizes = [1, 256], strides = [1, 1]} : vector<49x256xf32> to vector<1x256xf32>
    %152 = vector.extract_strided_slice %34 {offsets = [0, 32], sizes = [1, 256], strides = [1, 1]} : vector<1x358xf32> to vector<1x256xf32>
    %153 = arith.mulf %151, %152 : vector<1x256xf32>
    %154 = vector.extract_strided_slice %37 {offsets = [14, 0], sizes = [1, 256], strides = [1, 1]} : vector<49x256xf32> to vector<1x256xf32>
    %155 = vector.extract_strided_slice %35 {offsets = [0, 32], sizes = [1, 256], strides = [1, 1]} : vector<1x358xf32> to vector<1x256xf32>
    %156 = arith.mulf %154, %155 : vector<1x256xf32>
    %157 = arith.addf %153, %156 : vector<1x256xf32>
    %158 = arith.addf %150, %157 : vector<1x256xf32>
    %159 = vector.extract_strided_slice %36 {offsets = [15, 0], sizes = [1, 256], strides = [1, 1]} : vector<49x256xf32> to vector<1x256xf32>
    %160 = vector.extract_strided_slice %34 {offsets = [0, 33], sizes = [1, 256], strides = [1, 1]} : vector<1x358xf32> to vector<1x256xf32>
    %161 = arith.mulf %159, %160 : vector<1x256xf32>
    %162 = vector.extract_strided_slice %37 {offsets = [15, 0], sizes = [1, 256], strides = [1, 1]} : vector<49x256xf32> to vector<1x256xf32>
    %163 = vector.extract_strided_slice %35 {offsets = [0, 33], sizes = [1, 256], strides = [1, 1]} : vector<1x358xf32> to vector<1x256xf32>
    %164 = arith.mulf %162, %163 : vector<1x256xf32>
    %165 = arith.addf %161, %164 : vector<1x256xf32>
    %166 = arith.addf %158, %165 : vector<1x256xf32>
    %167 = vector.extract_strided_slice %36 {offsets = [16, 0], sizes = [1, 256], strides = [1, 1]} : vector<49x256xf32> to vector<1x256xf32>
    %168 = vector.extract_strided_slice %34 {offsets = [0, 34], sizes = [1, 256], strides = [1, 1]} : vector<1x358xf32> to vector<1x256xf32>
    %169 = arith.mulf %167, %168 : vector<1x256xf32>
    %170 = vector.extract_strided_slice %37 {offsets = [16, 0], sizes = [1, 256], strides = [1, 1]} : vector<49x256xf32> to vector<1x256xf32>
    %171 = vector.extract_strided_slice %35 {offsets = [0, 34], sizes = [1, 256], strides = [1, 1]} : vector<1x358xf32> to vector<1x256xf32>
    %172 = arith.mulf %170, %171 : vector<1x256xf32>
    %173 = arith.addf %169, %172 : vector<1x256xf32>
    %174 = arith.addf %166, %173 : vector<1x256xf32>
    %175 = vector.extract_strided_slice %36 {offsets = [17, 0], sizes = [1, 256], strides = [1, 1]} : vector<49x256xf32> to vector<1x256xf32>
    %176 = vector.extract_strided_slice %34 {offsets = [0, 35], sizes = [1, 256], strides = [1, 1]} : vector<1x358xf32> to vector<1x256xf32>
    %177 = arith.mulf %175, %176 : vector<1x256xf32>
    %178 = vector.extract_strided_slice %37 {offsets = [17, 0], sizes = [1, 256], strides = [1, 1]} : vector<49x256xf32> to vector<1x256xf32>
    %179 = vector.extract_strided_slice %35 {offsets = [0, 35], sizes = [1, 256], strides = [1, 1]} : vector<1x358xf32> to vector<1x256xf32>
    %180 = arith.mulf %178, %179 : vector<1x256xf32>
    %181 = arith.addf %177, %180 : vector<1x256xf32>
    %182 = arith.addf %174, %181 : vector<1x256xf32>
    %183 = vector.extract_strided_slice %36 {offsets = [18, 0], sizes = [1, 256], strides = [1, 1]} : vector<49x256xf32> to vector<1x256xf32>
    %184 = vector.extract_strided_slice %34 {offsets = [0, 36], sizes = [1, 256], strides = [1, 1]} : vector<1x358xf32> to vector<1x256xf32>
    %185 = arith.mulf %183, %184 : vector<1x256xf32>
    %186 = vector.extract_strided_slice %37 {offsets = [18, 0], sizes = [1, 256], strides = [1, 1]} : vector<49x256xf32> to vector<1x256xf32>
    %187 = vector.extract_strided_slice %35 {offsets = [0, 36], sizes = [1, 256], strides = [1, 1]} : vector<1x358xf32> to vector<1x256xf32>
    %188 = arith.mulf %186, %187 : vector<1x256xf32>
    %189 = arith.addf %185, %188 : vector<1x256xf32>
    %190 = arith.addf %182, %189 : vector<1x256xf32>
    %191 = vector.extract_strided_slice %36 {offsets = [19, 0], sizes = [1, 256], strides = [1, 1]} : vector<49x256xf32> to vector<1x256xf32>
    %192 = vector.extract_strided_slice %34 {offsets = [0, 37], sizes = [1, 256], strides = [1, 1]} : vector<1x358xf32> to vector<1x256xf32>
    %193 = arith.mulf %191, %192 : vector<1x256xf32>
    %194 = vector.extract_strided_slice %37 {offsets = [19, 0], sizes = [1, 256], strides = [1, 1]} : vector<49x256xf32> to vector<1x256xf32>
    %195 = vector.extract_strided_slice %35 {offsets = [0, 37], sizes = [1, 256], strides = [1, 1]} : vector<1x358xf32> to vector<1x256xf32>
    %196 = arith.mulf %194, %195 : vector<1x256xf32>
    %197 = arith.addf %193, %196 : vector<1x256xf32>
    %198 = arith.addf %190, %197 : vector<1x256xf32>
    %199 = vector.extract_strided_slice %36 {offsets = [20, 0], sizes = [1, 256], strides = [1, 1]} : vector<49x256xf32> to vector<1x256xf32>
    %200 = vector.extract_strided_slice %34 {offsets = [0, 38], sizes = [1, 256], strides = [1, 1]} : vector<1x358xf32> to vector<1x256xf32>
    %201 = arith.mulf %199, %200 : vector<1x256xf32>
    %202 = vector.extract_strided_slice %37 {offsets = [20, 0], sizes = [1, 256], strides = [1, 1]} : vector<49x256xf32> to vector<1x256xf32>
    %203 = vector.extract_strided_slice %35 {offsets = [0, 38], sizes = [1, 256], strides = [1, 1]} : vector<1x358xf32> to vector<1x256xf32>
    %204 = arith.mulf %202, %203 : vector<1x256xf32>
    %205 = arith.addf %201, %204 : vector<1x256xf32>
    %206 = arith.addf %198, %205 : vector<1x256xf32>
    %207 = vector.extract_strided_slice %36 {offsets = [21, 0], sizes = [1, 256], strides = [1, 1]} : vector<49x256xf32> to vector<1x256xf32>
    %208 = vector.extract_strided_slice %34 {offsets = [0, 48], sizes = [1, 256], strides = [1, 1]} : vector<1x358xf32> to vector<1x256xf32>
    %209 = arith.mulf %207, %208 : vector<1x256xf32>
    %210 = vector.extract_strided_slice %37 {offsets = [21, 0], sizes = [1, 256], strides = [1, 1]} : vector<49x256xf32> to vector<1x256xf32>
    %211 = vector.extract_strided_slice %35 {offsets = [0, 48], sizes = [1, 256], strides = [1, 1]} : vector<1x358xf32> to vector<1x256xf32>
    %212 = arith.mulf %210, %211 : vector<1x256xf32>
    %213 = arith.addf %209, %212 : vector<1x256xf32>
    %214 = arith.addf %206, %213 : vector<1x256xf32>
    %215 = vector.extract_strided_slice %36 {offsets = [22, 0], sizes = [1, 256], strides = [1, 1]} : vector<49x256xf32> to vector<1x256xf32>
    %216 = vector.extract_strided_slice %34 {offsets = [0, 49], sizes = [1, 256], strides = [1, 1]} : vector<1x358xf32> to vector<1x256xf32>
    %217 = arith.mulf %215, %216 : vector<1x256xf32>
    %218 = vector.extract_strided_slice %37 {offsets = [22, 0], sizes = [1, 256], strides = [1, 1]} : vector<49x256xf32> to vector<1x256xf32>
    %219 = vector.extract_strided_slice %35 {offsets = [0, 49], sizes = [1, 256], strides = [1, 1]} : vector<1x358xf32> to vector<1x256xf32>
    %220 = arith.mulf %218, %219 : vector<1x256xf32>
    %221 = arith.addf %217, %220 : vector<1x256xf32>
    %222 = arith.addf %214, %221 : vector<1x256xf32>
    %223 = vector.extract_strided_slice %36 {offsets = [23, 0], sizes = [1, 256], strides = [1, 1]} : vector<49x256xf32> to vector<1x256xf32>
    %224 = vector.extract_strided_slice %34 {offsets = [0, 50], sizes = [1, 256], strides = [1, 1]} : vector<1x358xf32> to vector<1x256xf32>
    %225 = arith.mulf %223, %224 : vector<1x256xf32>
    %226 = vector.extract_strided_slice %37 {offsets = [23, 0], sizes = [1, 256], strides = [1, 1]} : vector<49x256xf32> to vector<1x256xf32>
    %227 = vector.extract_strided_slice %35 {offsets = [0, 50], sizes = [1, 256], strides = [1, 1]} : vector<1x358xf32> to vector<1x256xf32>
    %228 = arith.mulf %226, %227 : vector<1x256xf32>
    %229 = arith.addf %225, %228 : vector<1x256xf32>
    %230 = arith.addf %222, %229 : vector<1x256xf32>
    %231 = vector.extract_strided_slice %36 {offsets = [24, 0], sizes = [1, 256], strides = [1, 1]} : vector<49x256xf32> to vector<1x256xf32>
    %232 = vector.extract_strided_slice %34 {offsets = [0, 51], sizes = [1, 256], strides = [1, 1]} : vector<1x358xf32> to vector<1x256xf32>
    %233 = arith.mulf %231, %232 : vector<1x256xf32>
    %234 = vector.extract_strided_slice %37 {offsets = [24, 0], sizes = [1, 256], strides = [1, 1]} : vector<49x256xf32> to vector<1x256xf32>
    %235 = vector.extract_strided_slice %35 {offsets = [0, 51], sizes = [1, 256], strides = [1, 1]} : vector<1x358xf32> to vector<1x256xf32>
    %236 = arith.mulf %234, %235 : vector<1x256xf32>
    %237 = arith.addf %233, %236 : vector<1x256xf32>
    %238 = arith.addf %230, %237 : vector<1x256xf32>
    %239 = vector.extract_strided_slice %36 {offsets = [25, 0], sizes = [1, 256], strides = [1, 1]} : vector<49x256xf32> to vector<1x256xf32>
    %240 = vector.extract_strided_slice %34 {offsets = [0, 52], sizes = [1, 256], strides = [1, 1]} : vector<1x358xf32> to vector<1x256xf32>
    %241 = arith.mulf %239, %240 : vector<1x256xf32>
    %242 = vector.extract_strided_slice %37 {offsets = [25, 0], sizes = [1, 256], strides = [1, 1]} : vector<49x256xf32> to vector<1x256xf32>
    %243 = vector.extract_strided_slice %35 {offsets = [0, 52], sizes = [1, 256], strides = [1, 1]} : vector<1x358xf32> to vector<1x256xf32>
    %244 = arith.mulf %242, %243 : vector<1x256xf32>
    %245 = arith.addf %241, %244 : vector<1x256xf32>
    %246 = arith.addf %238, %245 : vector<1x256xf32>
    %247 = vector.extract_strided_slice %36 {offsets = [26, 0], sizes = [1, 256], strides = [1, 1]} : vector<49x256xf32> to vector<1x256xf32>
    %248 = vector.extract_strided_slice %34 {offsets = [0, 53], sizes = [1, 256], strides = [1, 1]} : vector<1x358xf32> to vector<1x256xf32>
    %249 = arith.mulf %247, %248 : vector<1x256xf32>
    %250 = vector.extract_strided_slice %37 {offsets = [26, 0], sizes = [1, 256], strides = [1, 1]} : vector<49x256xf32> to vector<1x256xf32>
    %251 = vector.extract_strided_slice %35 {offsets = [0, 53], sizes = [1, 256], strides = [1, 1]} : vector<1x358xf32> to vector<1x256xf32>
    %252 = arith.mulf %250, %251 : vector<1x256xf32>
    %253 = arith.addf %249, %252 : vector<1x256xf32>
    %254 = arith.addf %246, %253 : vector<1x256xf32>
    %255 = vector.extract_strided_slice %36 {offsets = [27, 0], sizes = [1, 256], strides = [1, 1]} : vector<49x256xf32> to vector<1x256xf32>
    %256 = vector.extract_strided_slice %34 {offsets = [0, 54], sizes = [1, 256], strides = [1, 1]} : vector<1x358xf32> to vector<1x256xf32>
    %257 = arith.mulf %255, %256 : vector<1x256xf32>
    %258 = vector.extract_strided_slice %37 {offsets = [27, 0], sizes = [1, 256], strides = [1, 1]} : vector<49x256xf32> to vector<1x256xf32>
    %259 = vector.extract_strided_slice %35 {offsets = [0, 54], sizes = [1, 256], strides = [1, 1]} : vector<1x358xf32> to vector<1x256xf32>
    %260 = arith.mulf %258, %259 : vector<1x256xf32>
    %261 = arith.addf %257, %260 : vector<1x256xf32>
    %262 = arith.addf %254, %261 : vector<1x256xf32>
    %263 = vector.extract_strided_slice %36 {offsets = [28, 0], sizes = [1, 256], strides = [1, 1]} : vector<49x256xf32> to vector<1x256xf32>
    %264 = vector.extract_strided_slice %34 {offsets = [0, 64], sizes = [1, 256], strides = [1, 1]} : vector<1x358xf32> to vector<1x256xf32>
    %265 = arith.mulf %263, %264 : vector<1x256xf32>
    %266 = vector.extract_strided_slice %37 {offsets = [28, 0], sizes = [1, 256], strides = [1, 1]} : vector<49x256xf32> to vector<1x256xf32>
    %267 = vector.extract_strided_slice %35 {offsets = [0, 64], sizes = [1, 256], strides = [1, 1]} : vector<1x358xf32> to vector<1x256xf32>
    %268 = arith.mulf %266, %267 : vector<1x256xf32>
    %269 = arith.addf %265, %268 : vector<1x256xf32>
    %270 = arith.addf %262, %269 : vector<1x256xf32>
    %271 = vector.extract_strided_slice %36 {offsets = [29, 0], sizes = [1, 256], strides = [1, 1]} : vector<49x256xf32> to vector<1x256xf32>
    %272 = vector.extract_strided_slice %34 {offsets = [0, 65], sizes = [1, 256], strides = [1, 1]} : vector<1x358xf32> to vector<1x256xf32>
    %273 = arith.mulf %271, %272 : vector<1x256xf32>
    %274 = vector.extract_strided_slice %37 {offsets = [29, 0], sizes = [1, 256], strides = [1, 1]} : vector<49x256xf32> to vector<1x256xf32>
    %275 = vector.extract_strided_slice %35 {offsets = [0, 65], sizes = [1, 256], strides = [1, 1]} : vector<1x358xf32> to vector<1x256xf32>
    %276 = arith.mulf %274, %275 : vector<1x256xf32>
    %277 = arith.addf %273, %276 : vector<1x256xf32>
    %278 = arith.addf %270, %277 : vector<1x256xf32>
    %279 = vector.extract_strided_slice %36 {offsets = [30, 0], sizes = [1, 256], strides = [1, 1]} : vector<49x256xf32> to vector<1x256xf32>
    %280 = vector.extract_strided_slice %34 {offsets = [0, 66], sizes = [1, 256], strides = [1, 1]} : vector<1x358xf32> to vector<1x256xf32>
    %281 = arith.mulf %279, %280 : vector<1x256xf32>
    %282 = vector.extract_strided_slice %37 {offsets = [30, 0], sizes = [1, 256], strides = [1, 1]} : vector<49x256xf32> to vector<1x256xf32>
    %283 = vector.extract_strided_slice %35 {offsets = [0, 66], sizes = [1, 256], strides = [1, 1]} : vector<1x358xf32> to vector<1x256xf32>
    %284 = arith.mulf %282, %283 : vector<1x256xf32>
    %285 = arith.addf %281, %284 : vector<1x256xf32>
    %286 = arith.addf %278, %285 : vector<1x256xf32>
    %287 = vector.extract_strided_slice %36 {offsets = [31, 0], sizes = [1, 256], strides = [1, 1]} : vector<49x256xf32> to vector<1x256xf32>
    %288 = vector.extract_strided_slice %34 {offsets = [0, 67], sizes = [1, 256], strides = [1, 1]} : vector<1x358xf32> to vector<1x256xf32>
    %289 = arith.mulf %287, %288 : vector<1x256xf32>
    %290 = vector.extract_strided_slice %37 {offsets = [31, 0], sizes = [1, 256], strides = [1, 1]} : vector<49x256xf32> to vector<1x256xf32>
    %291 = vector.extract_strided_slice %35 {offsets = [0, 67], sizes = [1, 256], strides = [1, 1]} : vector<1x358xf32> to vector<1x256xf32>
    %292 = arith.mulf %290, %291 : vector<1x256xf32>
    %293 = arith.addf %289, %292 : vector<1x256xf32>
    %294 = arith.addf %286, %293 : vector<1x256xf32>
    %295 = vector.extract_strided_slice %36 {offsets = [32, 0], sizes = [1, 256], strides = [1, 1]} : vector<49x256xf32> to vector<1x256xf32>
    %296 = vector.extract_strided_slice %34 {offsets = [0, 68], sizes = [1, 256], strides = [1, 1]} : vector<1x358xf32> to vector<1x256xf32>
    %297 = arith.mulf %295, %296 : vector<1x256xf32>
    %298 = vector.extract_strided_slice %37 {offsets = [32, 0], sizes = [1, 256], strides = [1, 1]} : vector<49x256xf32> to vector<1x256xf32>
    %299 = vector.extract_strided_slice %35 {offsets = [0, 68], sizes = [1, 256], strides = [1, 1]} : vector<1x358xf32> to vector<1x256xf32>
    %300 = arith.mulf %298, %299 : vector<1x256xf32>
    %301 = arith.addf %297, %300 : vector<1x256xf32>
    %302 = arith.addf %294, %301 : vector<1x256xf32>
    %303 = vector.extract_strided_slice %36 {offsets = [33, 0], sizes = [1, 256], strides = [1, 1]} : vector<49x256xf32> to vector<1x256xf32>
    %304 = vector.extract_strided_slice %34 {offsets = [0, 69], sizes = [1, 256], strides = [1, 1]} : vector<1x358xf32> to vector<1x256xf32>
    %305 = arith.mulf %303, %304 : vector<1x256xf32>
    %306 = vector.extract_strided_slice %37 {offsets = [33, 0], sizes = [1, 256], strides = [1, 1]} : vector<49x256xf32> to vector<1x256xf32>
    %307 = vector.extract_strided_slice %35 {offsets = [0, 69], sizes = [1, 256], strides = [1, 1]} : vector<1x358xf32> to vector<1x256xf32>
    %308 = arith.mulf %306, %307 : vector<1x256xf32>
    %309 = arith.addf %305, %308 : vector<1x256xf32>
    %310 = arith.addf %302, %309 : vector<1x256xf32>
    %311 = vector.extract_strided_slice %36 {offsets = [34, 0], sizes = [1, 256], strides = [1, 1]} : vector<49x256xf32> to vector<1x256xf32>
    %312 = vector.extract_strided_slice %34 {offsets = [0, 70], sizes = [1, 256], strides = [1, 1]} : vector<1x358xf32> to vector<1x256xf32>
    %313 = arith.mulf %311, %312 : vector<1x256xf32>
    %314 = vector.extract_strided_slice %37 {offsets = [34, 0], sizes = [1, 256], strides = [1, 1]} : vector<49x256xf32> to vector<1x256xf32>
    %315 = vector.extract_strided_slice %35 {offsets = [0, 70], sizes = [1, 256], strides = [1, 1]} : vector<1x358xf32> to vector<1x256xf32>
    %316 = arith.mulf %314, %315 : vector<1x256xf32>
    %317 = arith.addf %313, %316 : vector<1x256xf32>
    %318 = arith.addf %310, %317 : vector<1x256xf32>
    %319 = vector.extract_strided_slice %36 {offsets = [35, 0], sizes = [1, 256], strides = [1, 1]} : vector<49x256xf32> to vector<1x256xf32>
    %320 = vector.extract_strided_slice %34 {offsets = [0, 80], sizes = [1, 256], strides = [1, 1]} : vector<1x358xf32> to vector<1x256xf32>
    %321 = arith.mulf %319, %320 : vector<1x256xf32>
    %322 = vector.extract_strided_slice %37 {offsets = [35, 0], sizes = [1, 256], strides = [1, 1]} : vector<49x256xf32> to vector<1x256xf32>
    %323 = vector.extract_strided_slice %35 {offsets = [0, 80], sizes = [1, 256], strides = [1, 1]} : vector<1x358xf32> to vector<1x256xf32>
    %324 = arith.mulf %322, %323 : vector<1x256xf32>
    %325 = arith.addf %321, %324 : vector<1x256xf32>
    %326 = arith.addf %318, %325 : vector<1x256xf32>
    %327 = vector.extract_strided_slice %36 {offsets = [36, 0], sizes = [1, 256], strides = [1, 1]} : vector<49x256xf32> to vector<1x256xf32>
    %328 = vector.extract_strided_slice %34 {offsets = [0, 81], sizes = [1, 256], strides = [1, 1]} : vector<1x358xf32> to vector<1x256xf32>
    %329 = arith.mulf %327, %328 : vector<1x256xf32>
    %330 = vector.extract_strided_slice %37 {offsets = [36, 0], sizes = [1, 256], strides = [1, 1]} : vector<49x256xf32> to vector<1x256xf32>
    %331 = vector.extract_strided_slice %35 {offsets = [0, 81], sizes = [1, 256], strides = [1, 1]} : vector<1x358xf32> to vector<1x256xf32>
    %332 = arith.mulf %330, %331 : vector<1x256xf32>
    %333 = arith.addf %329, %332 : vector<1x256xf32>
    %334 = arith.addf %326, %333 : vector<1x256xf32>
    %335 = vector.extract_strided_slice %36 {offsets = [37, 0], sizes = [1, 256], strides = [1, 1]} : vector<49x256xf32> to vector<1x256xf32>
    %336 = vector.extract_strided_slice %34 {offsets = [0, 82], sizes = [1, 256], strides = [1, 1]} : vector<1x358xf32> to vector<1x256xf32>
    %337 = arith.mulf %335, %336 : vector<1x256xf32>
    %338 = vector.extract_strided_slice %37 {offsets = [37, 0], sizes = [1, 256], strides = [1, 1]} : vector<49x256xf32> to vector<1x256xf32>
    %339 = vector.extract_strided_slice %35 {offsets = [0, 82], sizes = [1, 256], strides = [1, 1]} : vector<1x358xf32> to vector<1x256xf32>
    %340 = arith.mulf %338, %339 : vector<1x256xf32>
    %341 = arith.addf %337, %340 : vector<1x256xf32>
    %342 = arith.addf %334, %341 : vector<1x256xf32>
    %343 = vector.extract_strided_slice %36 {offsets = [38, 0], sizes = [1, 256], strides = [1, 1]} : vector<49x256xf32> to vector<1x256xf32>
    %344 = vector.extract_strided_slice %34 {offsets = [0, 83], sizes = [1, 256], strides = [1, 1]} : vector<1x358xf32> to vector<1x256xf32>
    %345 = arith.mulf %343, %344 : vector<1x256xf32>
    %346 = vector.extract_strided_slice %37 {offsets = [38, 0], sizes = [1, 256], strides = [1, 1]} : vector<49x256xf32> to vector<1x256xf32>
    %347 = vector.extract_strided_slice %35 {offsets = [0, 83], sizes = [1, 256], strides = [1, 1]} : vector<1x358xf32> to vector<1x256xf32>
    %348 = arith.mulf %346, %347 : vector<1x256xf32>
    %349 = arith.addf %345, %348 : vector<1x256xf32>
    %350 = arith.addf %342, %349 : vector<1x256xf32>
    %351 = vector.extract_strided_slice %36 {offsets = [39, 0], sizes = [1, 256], strides = [1, 1]} : vector<49x256xf32> to vector<1x256xf32>
    %352 = vector.extract_strided_slice %34 {offsets = [0, 84], sizes = [1, 256], strides = [1, 1]} : vector<1x358xf32> to vector<1x256xf32>
    %353 = arith.mulf %351, %352 : vector<1x256xf32>
    %354 = vector.extract_strided_slice %37 {offsets = [39, 0], sizes = [1, 256], strides = [1, 1]} : vector<49x256xf32> to vector<1x256xf32>
    %355 = vector.extract_strided_slice %35 {offsets = [0, 84], sizes = [1, 256], strides = [1, 1]} : vector<1x358xf32> to vector<1x256xf32>
    %356 = arith.mulf %354, %355 : vector<1x256xf32>
    %357 = arith.addf %353, %356 : vector<1x256xf32>
    %358 = arith.addf %350, %357 : vector<1x256xf32>
    %359 = vector.extract_strided_slice %36 {offsets = [40, 0], sizes = [1, 256], strides = [1, 1]} : vector<49x256xf32> to vector<1x256xf32>
    %360 = vector.extract_strided_slice %34 {offsets = [0, 85], sizes = [1, 256], strides = [1, 1]} : vector<1x358xf32> to vector<1x256xf32>
    %361 = arith.mulf %359, %360 : vector<1x256xf32>
    %362 = vector.extract_strided_slice %37 {offsets = [40, 0], sizes = [1, 256], strides = [1, 1]} : vector<49x256xf32> to vector<1x256xf32>
    %363 = vector.extract_strided_slice %35 {offsets = [0, 85], sizes = [1, 256], strides = [1, 1]} : vector<1x358xf32> to vector<1x256xf32>
    %364 = arith.mulf %362, %363 : vector<1x256xf32>
    %365 = arith.addf %361, %364 : vector<1x256xf32>
    %366 = arith.addf %358, %365 : vector<1x256xf32>
    %367 = vector.extract_strided_slice %36 {offsets = [41, 0], sizes = [1, 256], strides = [1, 1]} : vector<49x256xf32> to vector<1x256xf32>
    %368 = vector.extract_strided_slice %34 {offsets = [0, 86], sizes = [1, 256], strides = [1, 1]} : vector<1x358xf32> to vector<1x256xf32>
    %369 = arith.mulf %367, %368 : vector<1x256xf32>
    %370 = vector.extract_strided_slice %37 {offsets = [41, 0], sizes = [1, 256], strides = [1, 1]} : vector<49x256xf32> to vector<1x256xf32>
    %371 = vector.extract_strided_slice %35 {offsets = [0, 86], sizes = [1, 256], strides = [1, 1]} : vector<1x358xf32> to vector<1x256xf32>
    %372 = arith.mulf %370, %371 : vector<1x256xf32>
    %373 = arith.addf %369, %372 : vector<1x256xf32>
    %374 = arith.addf %366, %373 : vector<1x256xf32>
    %375 = vector.extract_strided_slice %36 {offsets = [42, 0], sizes = [1, 256], strides = [1, 1]} : vector<49x256xf32> to vector<1x256xf32>
    %376 = vector.extract_strided_slice %34 {offsets = [0, 96], sizes = [1, 256], strides = [1, 1]} : vector<1x358xf32> to vector<1x256xf32>
    %377 = arith.mulf %375, %376 : vector<1x256xf32>
    %378 = vector.extract_strided_slice %37 {offsets = [42, 0], sizes = [1, 256], strides = [1, 1]} : vector<49x256xf32> to vector<1x256xf32>
    %379 = vector.extract_strided_slice %35 {offsets = [0, 96], sizes = [1, 256], strides = [1, 1]} : vector<1x358xf32> to vector<1x256xf32>
    %380 = arith.mulf %378, %379 : vector<1x256xf32>
    %381 = arith.addf %377, %380 : vector<1x256xf32>
    %382 = arith.addf %374, %381 : vector<1x256xf32>
    %383 = vector.extract_strided_slice %36 {offsets = [43, 0], sizes = [1, 256], strides = [1, 1]} : vector<49x256xf32> to vector<1x256xf32>
    %384 = vector.extract_strided_slice %34 {offsets = [0, 97], sizes = [1, 256], strides = [1, 1]} : vector<1x358xf32> to vector<1x256xf32>
    %385 = arith.mulf %383, %384 : vector<1x256xf32>
    %386 = vector.extract_strided_slice %37 {offsets = [43, 0], sizes = [1, 256], strides = [1, 1]} : vector<49x256xf32> to vector<1x256xf32>
    %387 = vector.extract_strided_slice %35 {offsets = [0, 97], sizes = [1, 256], strides = [1, 1]} : vector<1x358xf32> to vector<1x256xf32>
    %388 = arith.mulf %386, %387 : vector<1x256xf32>
    %389 = arith.addf %385, %388 : vector<1x256xf32>
    %390 = arith.addf %382, %389 : vector<1x256xf32>
    %391 = vector.extract_strided_slice %36 {offsets = [44, 0], sizes = [1, 256], strides = [1, 1]} : vector<49x256xf32> to vector<1x256xf32>
    %392 = vector.extract_strided_slice %34 {offsets = [0, 98], sizes = [1, 256], strides = [1, 1]} : vector<1x358xf32> to vector<1x256xf32>
    %393 = arith.mulf %391, %392 : vector<1x256xf32>
    %394 = vector.extract_strided_slice %37 {offsets = [44, 0], sizes = [1, 256], strides = [1, 1]} : vector<49x256xf32> to vector<1x256xf32>
    %395 = vector.extract_strided_slice %35 {offsets = [0, 98], sizes = [1, 256], strides = [1, 1]} : vector<1x358xf32> to vector<1x256xf32>
    %396 = arith.mulf %394, %395 : vector<1x256xf32>
    %397 = arith.addf %393, %396 : vector<1x256xf32>
    %398 = arith.addf %390, %397 : vector<1x256xf32>
    %399 = vector.extract_strided_slice %36 {offsets = [45, 0], sizes = [1, 256], strides = [1, 1]} : vector<49x256xf32> to vector<1x256xf32>
    %400 = vector.extract_strided_slice %34 {offsets = [0, 99], sizes = [1, 256], strides = [1, 1]} : vector<1x358xf32> to vector<1x256xf32>
    %401 = arith.mulf %399, %400 : vector<1x256xf32>
    %402 = vector.extract_strided_slice %37 {offsets = [45, 0], sizes = [1, 256], strides = [1, 1]} : vector<49x256xf32> to vector<1x256xf32>
    %403 = vector.extract_strided_slice %35 {offsets = [0, 99], sizes = [1, 256], strides = [1, 1]} : vector<1x358xf32> to vector<1x256xf32>
    %404 = arith.mulf %402, %403 : vector<1x256xf32>
    %405 = arith.addf %401, %404 : vector<1x256xf32>
    %406 = arith.addf %398, %405 : vector<1x256xf32>
    %407 = vector.extract_strided_slice %36 {offsets = [46, 0], sizes = [1, 256], strides = [1, 1]} : vector<49x256xf32> to vector<1x256xf32>
    %408 = vector.extract_strided_slice %34 {offsets = [0, 100], sizes = [1, 256], strides = [1, 1]} : vector<1x358xf32> to vector<1x256xf32>
    %409 = arith.mulf %407, %408 : vector<1x256xf32>
    %410 = vector.extract_strided_slice %37 {offsets = [46, 0], sizes = [1, 256], strides = [1, 1]} : vector<49x256xf32> to vector<1x256xf32>
    %411 = vector.extract_strided_slice %35 {offsets = [0, 100], sizes = [1, 256], strides = [1, 1]} : vector<1x358xf32> to vector<1x256xf32>
    %412 = arith.mulf %410, %411 : vector<1x256xf32>
    %413 = arith.addf %409, %412 : vector<1x256xf32>
    %414 = arith.addf %406, %413 : vector<1x256xf32>
    %415 = vector.extract_strided_slice %36 {offsets = [47, 0], sizes = [1, 256], strides = [1, 1]} : vector<49x256xf32> to vector<1x256xf32>
    %416 = vector.extract_strided_slice %34 {offsets = [0, 101], sizes = [1, 256], strides = [1, 1]} : vector<1x358xf32> to vector<1x256xf32>
    %417 = arith.mulf %415, %416 : vector<1x256xf32>
    %418 = vector.extract_strided_slice %37 {offsets = [47, 0], sizes = [1, 256], strides = [1, 1]} : vector<49x256xf32> to vector<1x256xf32>
    %419 = vector.extract_strided_slice %35 {offsets = [0, 101], sizes = [1, 256], strides = [1, 1]} : vector<1x358xf32> to vector<1x256xf32>
    %420 = arith.mulf %418, %419 : vector<1x256xf32>
    %421 = arith.addf %417, %420 : vector<1x256xf32>
    %422 = arith.addf %414, %421 : vector<1x256xf32>
    %423 = vector.extract_strided_slice %36 {offsets = [48, 0], sizes = [1, 256], strides = [1, 1]} : vector<49x256xf32> to vector<1x256xf32>
    %424 = vector.extract_strided_slice %34 {offsets = [0, 102], sizes = [1, 256], strides = [1, 1]} : vector<1x358xf32> to vector<1x256xf32>
    %425 = arith.mulf %423, %424 : vector<1x256xf32>
    %426 = vector.extract_strided_slice %37 {offsets = [48, 0], sizes = [1, 256], strides = [1, 1]} : vector<49x256xf32> to vector<1x256xf32>
    %427 = vector.extract_strided_slice %35 {offsets = [0, 102], sizes = [1, 256], strides = [1, 1]} : vector<1x358xf32> to vector<1x256xf32>
    %428 = arith.mulf %426, %427 : vector<1x256xf32>
    %429 = arith.addf %425, %428 : vector<1x256xf32>
    %430 = arith.addf %422, %429 : vector<1x256xf32>
    %431 = arith.negf %430 : vector<1x256xf32>
    %432 = math.exp %431 : vector<1x256xf32>
    %cst_25 = arith.constant 1.000000e+00 : f32
    %433 = vector.broadcast %cst_25 : f32 to vector<1x256xf32>
    %434 = arith.addf %433, %432 : vector<1x256xf32>
    %435 = arith.divf %433, %434 : vector<1x256xf32>
    %436 = vector.shape_cast %435 : vector<1x256xf32> to vector<1x1x256xf32>
    %437 = vector.broadcast %436 : vector<1x1x256xf32> to vector<1x32x256xf32>
    %438 = arith.mulf %0, %437 : vector<1x32x256xf32>
    %439 = arith.addf %28, %438 : vector<1x32x256xf32>
    %c0_26 = arith.constant 0 : index
    %c0_27 = arith.constant 0 : index
    %c0_28 = arith.constant 0 : index
    %440 = vector.load %arg8[%c0_26, %c0_27, %c0_28] : memref<1x32x256xf32, #tpu.memory_space<vmem>>, vector<1x32x256xf32>
    tpu.vector_store %arg8[%c0_26, %c0_27, %c0_28], %439 {strides = array<i32>} : memref<1x32x256xf32, #tpu.memory_space<vmem>>, vector<1x32x256xf32>,
    return
  }
  func.func @transform_0(%arg0: i32) -> (i32, i32, i32) {
    %c0_i32 = arith.constant 0 : i32
    %c0_i32_0 = arith.constant 0 : i32
    %c0_i32_1 = arith.constant 0 : i32
    return %arg0, %c0_i32, %c0_i32_0 : i32, i32, i32
  }
  func.func @transform_1(%arg0: i32) -> (i32, i32) {
    %c0_i32 = arith.constant 0 : i32
    %c0_i32_0 = arith.constant 0 : i32
    %c0_i32_1 = arith.constant 0 : i32
    return %c0_i32, %c0_i32_0 : i32, i32
  }
  func.func @transform_2(%arg0: i32) -> (i32, i32) {
    %c0_i32 = arith.constant 0 : i32
    %c0_i32_0 = arith.constant 0 : i32
    %c0_i32_1 = arith.constant 0 : i32
    return %c0_i32, %c0_i32_0 : i32, i32
  }
  func.func @transform_3(%arg0: i32) -> (i32, i32) {
    %c0_i32 = arith.constant 0 : i32
    %c0_i32_0 = arith.constant 0 : i32
    %c0_i32_1 = arith.constant 0 : i32
    return %c0_i32, %c0_i32_0 : i32, i32
  }
  func.func @transform_4(%arg0: i32) -> (i32, i32) {
    %c0_i32 = arith.constant 0 : i32
    %c0_i32_0 = arith.constant 0 : i32
    %c0_i32_1 = arith.constant 0 : i32
    return %c0_i32, %c0_i32_0 : i32, i32
  }
  func.func @transform_5(%arg0: i32) -> (i32, i32) {
    %c0_i32 = arith.constant 0 : i32
    %c0_i32_0 = arith.constant 0 : i32
    %c0_i32_1 = arith.constant 0 : i32
    return %c0_i32, %c0_i32_0 : i32, i32
  }
  func.func @transform_6(%arg0: i32) -> (i32, i32) {
    %c0_i32 = arith.constant 0 : i32
    %c0_i32_0 = arith.constant 0 : i32
    %c0_i32_1 = arith.constant 0 : i32
    return %c0_i32, %c0_i32_0 : i32, i32
  }
  func.func @transform_7(%arg0: i32) -> (i32, i32, i32) {
    %c0_i32 = arith.constant 0 : i32
    %c0_i32_0 = arith.constant 0 : i32
    %c0_i32_1 = arith.constant 0 : i32
    return %arg0, %c0_i32, %c0_i32_0 : i32, i32, i32
  }
}

</mosaic_0001>

<llo_original>
// kernel: mul.9
$region0: #{mul.9}
  %s0 = inlined_call_operand.vmem [shape: f32[7,7], index: 0, kind: input, shape index: {}]
  %s1 = inlined_call_operand.vmem [shape: f32[49], index: 1, kind: output, shape index: {}]
  $region1: #{mul.9} parent=0
    #allocation0 [shape = 'u8[4096]{0}', space=vmem, size = 0x1000, scoped, tag = 'scoped mem for output reshape']
    %v2 = vld [vmem:[%s0] sm:$0x1]
    %vm3 = vcmask 56320
    %4 = vst.msk [vmem:[#allocation0] sm:$0x1] %vm3, %v2
    %s5 = scalar_lea.vmem %s0, 6
    %v6 = vld [vmem:[%s5] sm:$0x1]
    %7 = vrot.lane.b32.xlu0 %v6, 42
    %v8 = vpop.permute.xlu0 %7
    %vm9 = vcmask 400720
    %10 = vst.msk [vmem:[#allocation0] sm:$0x1] %vm9, %v8
    %s11 = scalar_lea.vmem %s0, 5
    %v12 = vld [vmem:[%s11] sm:$0x1]
    %13 = vrot.lane.b32.xlu0 %v12, 35
    %v14 = vpop.permute.xlu0 %13
    %vm15 = vcmask 343320
    %16 = vst.msk [vmem:[#allocation0] sm:$0x1] %vm15, %v14
    %s17 = scalar_lea.vmem %s0, 4
    %v18 = vld [vmem:[%s17] sm:$0x1]
    %19 = vrot.lane.b32.xlu0 %v18, 28
    %v20 = vpop.permute.xlu0 %19
    %vm21 = vcmask 285920
    %22 = vst.msk [vmem:[#allocation0] sm:$0x1] %vm21, %v20
    %s23 = scalar_lea.vmem %s0, 3
    %v24 = vld [vmem:[%s23] sm:$0x1]
    %25 = vrot.lane.b32.xlu0 %v24, 21
    %v26 = vpop.permute.xlu0 %25
    %vm27 = vcmask 228520
    %28 = vst.msk [vmem:[#allocation0] sm:$0x1] %vm27, %v26
    %s29 = scalar_lea.vmem %s0, 2
    %v30 = vld [vmem:[%s29] sm:$0x1]
    %31 = vrot.lane.b32.xlu0 %v30, 14
    %v32 = vpop.permute.xlu0 %31
    %vm33 = vcmask 171120
    %34 = vst.msk [vmem:[#allocation0] sm:$0x1] %vm33, %v32
    %s35 = scalar_lea.vmem %s0, 1
    %v36 = vld [vmem:[%s35] sm:$0x1]
    %37 = vrot.lane.b32.xlu0 %v36, 7
    %v38 = vpop.permute.xlu0 %37
    %vm39 = vcmask 113720
    %40 = vst.msk [vmem:[#allocation0] sm:$0x1] %vm39, %v38
    %s42 = sshll.u32 1, 1
    %s43 = ssub.s32 %s42, 1
    %v45 = vld [vmem:[#allocation0] sm:%s43]
    %s46 = sshll.u32 1, 1
    %s47 = ssub.s32 %s46, 1
    %48 = vst [vmem:[%s1] sm:%s47] %v45

// kernel: cbam_forward.1
$region0: #{cbam_forward.1}
  #allocation0 [shape = 'u32[]', space=smem, size = 0x4, offset = 0x4, fixed_abs, tag = 'smem constant byte address 0x4 - core index']
  #allocation1 [shape = 'u32[144,128]{1,0:T(1,128)}', space=vmem, size = 0x12000, scoped, tag = 'internal scratch']
  %s0 = inlined_call_operand.vmem [shape: f32[2,32,256], index: 0, kind: input, shape index: {}]
  %s1 = inlined_call_operand.vmem [shape: f32[32,4], index: 1, kind: input, shape index: {}]
  %s2 = inlined_call_operand.vmem [shape: f32[1,4], index: 2, kind: input, shape index: {}]
  %s3 = inlined_call_operand.vmem [shape: f32[4,32], index: 3, kind: input, shape index: {}]
  %s4 = inlined_call_operand.vmem [shape: f32[1,32], index: 4, kind: input, shape index: {}]
  %s5 = inlined_call_operand.vmem [shape: f32[49,256], index: 5, kind: input, shape index: {}]
  %s6 = inlined_call_operand.vmem [shape: f32[49,256], index: 6, kind: input, shape index: {}]
  %s7 = inlined_call_operand.vmem [shape: f32[2,32,256], index: 7, kind: output, shape index: {}]
  %s8 = sld [smem:[#allocation0]]
  $region61: #{cbam_forward.1} parent=0
    _
  %s10 = ssub.s32 1, %s8
  %s11 = scalar_select 0, %s10, %s8
  loop: start=0, step=1, limit=4
  $region2: #{cbam_forward.1} parent=0 // loop_pre_header
    _
  $region3: #{cbam_forward.1} parent=0 // loop_header
    %s13 = sphi 0, %s17
    %p14 = scmp.ge.s32.totalorder %s13, 4
    %s23 = sphi 0, %s25
    %s26 = sphi 0, %s23
    %s27 = sphi 0, %s26
    %s43 = sphi 0, %s27
    %s47 = sphi 0, %s47
    %s49 = sphi 0, %s47
    %s50 = sphi 0, %s49
    %s64 = sphi 0, %s50
    %s68 = sphi 0, %s68
    %s70 = sphi 0, %s68
    %s71 = sphi 0, %s70
    %s85 = sphi 0, %s71
    %s89 = sphi 0, %s89
    %s91 = sphi 0, %s89
    %s92 = sphi 0, %s91
    %s106 = sphi 0, %s92
    %s110 = sphi 0, %s110
    %s112 = sphi 0, %s110
    %s113 = sphi 0, %s112
    %s127 = sphi 0, %s113
    %s131 = sphi 0, %s131
    %s133 = sphi 0, %s131
    %s134 = sphi 0, %s133
    %s148 = sphi 0, %s134
    %s152 = sphi 0, %s152
    %s154 = sphi 0, %s152
    %s155 = sphi 0, %s154
    %s169 = sphi 0, %s155
    %s175 = sphi 0, %s177
    %s178 = sphi 0, %s175
    %s179 = sphi 0, %s178
    %s195 = sphi 0, %s179
  $region4: #{cbam_forward.1} parent=0 // loop_header_branch
    %16 = sbr.rel (%p14) target = $region8
  $region5: #{cbam_forward.1} parent=0 // loop_body
    %s18 = ssub.s32 %s13, 1
    %s19 = ssub.s32 %s13, 2
    %s20 = sadd.s32 %s13, 1
    %s21 = ssub.s32 %s13, %s20
    %p22 = scmp.eq.s32.totalorder %s21, 0
    %s24 = sadd.s32 %s23, 1
    %s25 = scalar_select %p22, %s23, %s24
    %p28 = pneg %p22
    %p29 = scmp.eq.s32.totalorder %s13, 1
    %p30 = por %p28, %p29
    %p31 = scmp.ne.s32.totalorder %s23, %s26
    %p32 = scmp.eq.s32.totalorder %s13, 0
    %p33 = por %p31, %p32
    %p34 = scmp.ne.s32.totalorder %s23, %s26
    %p35 = scmp.eq.s32.totalorder %s18, 1
    %p36 = por %p34, %p35
    %p37 = scmp.ne.s32.totalorder %s26, %s27
    %p38 = scmp.eq.s32.totalorder %s18, 0
    %p39 = por %p37, %p38
    %p40 = scmp.ne.s32.totalorder %s26, %s27
    %p41 = scmp.eq.s32.totalorder %s19, 1
    %p42 = por %p40, %p41
    %p44 = scmp.ne.s32.totalorder %s27, %s43
    %p45 = scmp.eq.s32.totalorder %s19, 0
    %p46 = por %p44, %p45
    %s48 = sadd.s32 %s47, 1
    %p51 = scmp.eq.s32.totalorder %s13, 1
    %p52 = scmp.ne.s32.totalorder %s47, %s49
    %p53 = scmp.eq.s32.totalorder %s13, 0
    %p54 = por %p52, %p53
    %p55 = scmp.ne.s32.totalorder %s47, %s49
    %p56 = scmp.eq.s32.totalorder %s18, 1
    %p57 = por %p55, %p56
    %p58 = scmp.ne.s32.totalorder %s49, %s50
    %p59 = scmp.eq.s32.totalorder %s18, 0
    %p60 = por %p58, %p59
    %p61 = scmp.ne.s32.totalorder %s49, %s50
    %p62 = scmp.eq.s32.totalorder %s19, 1
    %p63 = por %p61, %p62
    %p65 = scmp.ne.s32.totalorder %s50, %s64
    %p66 = scmp.eq.s32.totalorder %s19, 0
    %p67 = por %p65, %p66
    %s69 = sadd.s32 %s68, 1
    %p72 = scmp.eq.s32.totalorder %s13, 1
    %p73 = scmp.ne.s32.totalorder %s68, %s70
    %p74 = scmp.eq.s32.totalorder %s13, 0
    %p75 = por %p73, %p74
    %p76 = scmp.ne.s32.totalorder %s68, %s70
    %p77 = scmp.eq.s32.totalorder %s18, 1
    %p78 = por %p76, %p77
    %p79 = scmp.ne.s32.totalorder %s70, %s71
    %p80 = scmp.eq.s32.totalorder %s18, 0
    %p81 = por %p79, %p80
    %p82 = scmp.ne.s32.totalorder %s70, %s71
    %p83 = scmp.eq.s32.totalorder %s19, 1
    %p84 = por %p82, %p83
    %p86 = scmp.ne.s32.totalorder %s71, %s85
    %p87 = scmp.eq.s32.totalorder %s19, 0
    %p88 = por %p86, %p87
    %s90 = sadd.s32 %s89, 1
    %p93 = scmp.eq.s32.totalorder %s13, 1
    %p94 = scmp.ne.s32.totalorder %s89, %s91
    %p95 = scmp.eq.s32.totalorder %s13, 0
    %p96 = por %p94, %p95
    %p97 = scmp.ne.s32.totalorder %s89, %s91
    %p98 = scmp.eq.s32.totalorder %s18, 1
    %p99 = por %p97, %p98
    %p100 = scmp.ne.s32.totalorder %s91, %s92
    %p101 = scmp.eq.s32.totalorder %s18, 0
    %p102 = por %p100, %p101
    %p103 = scmp.ne.s32.totalorder %s91, %s92
    %p104 = scmp.eq.s32.totalorder %s19, 1
    %p105 = por %p103, %p104
    %p107 = scmp.ne.s32.totalorder %s92, %s106
    %p108 = scmp.eq.s32.totalorder %s19, 0
    %p109 = por %p107, %p108
    %s111 = sadd.s32 %s110, 1
    %p114 = scmp.eq.s32.totalorder %s13, 1
    %p115 = scmp.ne.s32.totalorder %s110, %s112
    %p116 = scmp.eq.s32.totalorder %s13, 0
    %p117 = por %p115, %p116
    %p118 = scmp.ne.s32.totalorder %s110, %s112
    %p119 = scmp.eq.s32.totalorder %s18, 1
    %p120 = por %p118, %p119
    %p121 = scmp.ne.s32.totalorder %s112, %s113
    %p122 = scmp.eq.s32.totalorder %s18, 0
    %p123 = por %p121, %p122
    %p124 = scmp.ne.s32.totalorder %s112, %s113
    %p125 = scmp.eq.s32.totalorder %s19, 1
    %p126 = por %p124, %p125
    %p128 = scmp.ne.s32.totalorder %s113, %s127
    %p129 = scmp.eq.s32.totalorder %s19, 0
    %p130 = por %p128, %p129
    %s132 = sadd.s32 %s131, 1
    %p135 = scmp.eq.s32.totalorder %s13, 1
    %p136 = scmp.ne.s32.totalorder %s131, %s133
    %p137 = scmp.eq.s32.totalorder %s13, 0
    %p138 = por %p136, %p137
    %p139 = scmp.ne.s32.totalorder %s131, %s133
    %p140 = scmp.eq.s32.totalorder %s18, 1
    %p141 = por %p139, %p140
    %p142 = scmp.ne.s32.totalorder %s133, %s134
    %p143 = scmp.eq.s32.totalorder %s18, 0
    %p144 = por %p142, %p143
    %p145 = scmp.ne.s32.totalorder %s133, %s134
    %p146 = scmp.eq.s32.totalorder %s19, 1
    %p147 = por %p145, %p146
    %p149 = scmp.ne.s32.totalorder %s134, %s148
    %p150 = scmp.eq.s32.totalorder %s19, 0
    %p151 = por %p149, %p150
    %s153 = sadd.s32 %s152, 1
    %p156 = scmp.eq.s32.totalorder %s13, 1
    %p157 = scmp.ne.s32.totalorder %s152, %s154
    %p158 = scmp.eq.s32.totalorder %s13, 0
    %p159 = por %p157, %p158
    %p160 = scmp.ne.s32.totalorder %s152, %s154
    %p161 = scmp.eq.s32.totalorder %s18, 1
    %p162 = por %p160, %p161
    %p163 = scmp.ne.s32.totalorder %s154, %s155
    %p164 = scmp.eq.s32.totalorder %s18, 0
    %p165 = por %p163, %p164
    %p166 = scmp.ne.s32.totalorder %s154, %s155
    %p167 = scmp.eq.s32.totalorder %s19, 1
    %p168 = por %p166, %p167
    %p170 = scmp.ne.s32.totalorder %s155, %s169
    %p171 = scmp.eq.s32.totalorder %s19, 0
    %p172 = por %p170, %p171
    %s173 = ssub.s32 %s13, %s20
    %p174 = scmp.eq.s32.totalorder %s173, 0
    %s176 = sadd.s32 %s175, 1
    %s177 = scalar_select %p174, %s175, %s176
    %p180 = pneg %p174
    %p181 = scmp.eq.s32.totalorder %s13, 1
    %p182 = por %p180, %p181
    %p183 = scmp.ne.s32.totalorder %s175, %s178
    %p184 = scmp.eq.s32.totalorder %s13, 0
    %p185 = por %p183, %p184
    %p186 = scmp.ne.s32.totalorder %s175, %s178
    %p187 = scmp.eq.s32.totalorder %s18, 1
    %p188 = por %p186, %p187
    %p189 = scmp.ne.s32.totalorder %s178, %s179
    %p190 = scmp.eq.s32.totalorder %s18, 0
    %p191 = por %p189, %p190
    %p192 = scmp.ne.s32.totalorder %s178, %s179
    %p193 = scmp.eq.s32.totalorder %s19, 1
    %p194 = por %p192, %p193
    %p196 = scmp.ne.s32.totalorder %s179, %s195
    %p197 = scmp.eq.s32.totalorder %s19, 0
    %p198 = por %p196, %p197
    %p199 = scmp.le.s32.totalorder 1, %s13
    %p200 = scmp.lt.s32.totalorder %s13, 3
    %p201 = pnand %p199, %p200
    %p202 = pneg %p201
    // Predicated region
    $region9: #{cbam_forward.1} parent=5 // pred_check
      _
    $region10: #{cbam_forward.1} parent=5 // pred_check_branch
      %204 = sbr.rel (%p201) target = $region12
    $region11: #{cbam_forward.1} parent=5 // pred_region
      %s205 = ssub.s32 %s13, 1
      // Predicated region
      $region13: #{cbam_forward.1} parent=11 // pred_check
        %p206 = pneg %p60
      $region14: #{cbam_forward.1} parent=11 // pred_check_branch
        %208 = sbr.rel (%p206) target = $region16
      $region15: #{cbam_forward.1} parent=11 // pred_region
        _
      $region16: #{cbam_forward.1} parent=11 // pred_fallthru
        _
      // Predicated region
      $region17: #{cbam_forward.1} parent=11 // pred_check
        %p209 = pneg %p81
      $region18: #{cbam_forward.1} parent=11 // pred_check_branch
        %211 = sbr.rel (%p209) target = $region20
      $region19: #{cbam_forward.1} parent=11 // pred_region
        _
      $region20: #{cbam_forward.1} parent=11 // pred_fallthru
        _
      // Predicated region
      $region21: #{cbam_forward.1} parent=11 // pred_check
        %p212 = pneg %p102
      $region22: #{cbam_forward.1} parent=11 // pred_check_branch
        %214 = sbr.rel (%p212) target = $region24
      $region23: #{cbam_forward.1} parent=11 // pred_region
        _
      $region24: #{cbam_forward.1} parent=11 // pred_fallthru
        _
      // Predicated region
      $region25: #{cbam_forward.1} parent=11 // pred_check
        %p215 = pneg %p123
      $region26: #{cbam_forward.1} parent=11 // pred_check_branch
        %217 = sbr.rel (%p215) target = $region28
      $region27: #{cbam_forward.1} parent=11 // pred_region
        _
      $region28: #{cbam_forward.1} parent=11 // pred_fallthru
        _
      // Predicated region
      $region29: #{cbam_forward.1} parent=11 // pred_check
        %p218 = pneg %p144
      $region30: #{cbam_forward.1} parent=11 // pred_check_branch
        %220 = sbr.rel (%p218) target = $region32
      $region31: #{cbam_forward.1} parent=11 // pred_region
        _
      $region32: #{cbam_forward.1} parent=11 // pred_fallthru
        _
      // Predicated region
      $region33: #{cbam_forward.1} parent=11 // pred_check
        %p221 = pneg %p165
      $region34: #{cbam_forward.1} parent=11 // pred_check_branch
        %223 = sbr.rel (%p221) target = $region36
      $region35: #{cbam_forward.1} parent=11 // pred_region
        _
      $region36: #{cbam_forward.1} parent=11 // pred_fallthru
        _
    $region12: #{cbam_forward.1} parent=5 // pred_fallthru
      _
    %p224 = scmp.lt.s32.totalorder %s13, 2
    // Predicated region
    $region37: #{cbam_forward.1} parent=5 // pred_check
      %p225 = pneg %p224
    $region38: #{cbam_forward.1} parent=5 // pred_check_branch
      %227 = sbr.rel (%p225) target = $region40
    $region39: #{cbam_forward.1} parent=5 // pred_region
      // Predicated region
      $region41: #{cbam_forward.1} parent=39 // pred_check
        %p228 = pneg %p33
      $region42: #{cbam_forward.1} parent=39 // pred_check_branch
        %230 = sbr.rel (%p228) target = $region44
      $region43: #{cbam_forward.1} parent=39 // pred_region
        %p231 = scmp.lt.s32.totalorder %s13, 1
        %s232 = scalar_select %p231, %s13, 1
        %s233 = smul.addr %s232, 8
        %s234 = smul.addr %s233, 8
        %s235 = scalar_lea.vmem %s0, %s234
      $region44: #{cbam_forward.1} parent=39 // pred_fallthru
        _
    $region40: #{cbam_forward.1} parent=5 // pred_fallthru
      _
    %p236 = scmp.le.s32.totalorder 1, %s13
    %p237 = scmp.lt.s32.totalorder %s13, 3
    %p238 = pnand %p236, %p237
    %p239 = pneg %p238
    // Predicated region
    $region45: #{cbam_forward.1} parent=5 // pred_check
      _
    $region46: #{cbam_forward.1} parent=5 // pred_check_branch
      %241 = sbr.rel (%p238) target = $region48
    $region47: #{cbam_forward.1} parent=5 // pred_region
      %s242 = ssub.s32 %s13, 1
      %p243 = scmp.lt.s32.totalorder %s18, 1
      %s244 = scalar_select %p243, %s18, 1
      %s245 = smul.addr %s244, 8
      %s246 = smul.addr %s245, 8
      %s247 = scalar_lea.vmem %s0, %s246
      %p248 = pneg %p39
      %p249 = pneg %p36
      %p250 = pneg %p60
      %p251 = pneg %p57
      %p252 = pneg %p81
      %p253 = pneg %p78
      %p254 = pneg %p102
      %p255 = pneg %p99
      %p256 = pneg %p123
      %p257 = pneg %p120
      %p258 = pneg %p144
      %p259 = pneg %p141
      %p260 = pneg %p165
      %p261 = pneg %p162
      %p262 = pneg %p191
      %p263 = pneg %p188
      %p264 = scmp.lt.s32.totalorder %s18, 1
      %s265 = scalar_select %p264, %s18, 1
      %s266 = smul.addr %s265, 8
      %s267 = smul.addr %s266, 8
      %s268 = scalar_lea.vmem %s7, %s267
      %p269 = scmp.lt.s32.totalorder %s18, 1
      %s270 = scalar_select %p269, %s18, 1
      %s271 = smul.addr %s270, 8
      %s272 = smul.addr %s271, 8
      %s273 = scalar_lea.vmem %s0, %s272
      %p274 = scmp.lt.s32.totalorder %s18, 1
      %s275 = scalar_select %p274, %s18, 1
      %s276 = smul.addr %s275, 8
      %s277 = smul.addr %s276, 8
      %s278 = scalar_lea.vmem %s7, %s277
      %v279 = vld [vmem:[%s273] sm:$0xff]
      %v280 = vld [vmem:[%s273 + $0x8] sm:$0xff]
      %v281 = vld [vmem:[%s273 + $0x10] sm:$0xff]
      %v282 = vld [vmem:[%s273 + $0x18] sm:$0xff]
      %v283 = vld [vmem:[%s273 + $0x20] sm:$0xff]
      %v284 = vld [vmem:[%s273 + $0x28] sm:$0xff]
      %v285 = vld [vmem:[%s273 + $0x30] sm:$0xff]
      %v286 = vld [vmem:[%s273 + $0x38] sm:$0xff]
      %v287 = vadd.f32 %v279, %v280
      %288 = vadd.xlane.f32.xlu0 %v287
      %v289 = vpop.xlane.xlu0 %288
      %v290 = vadd.f32 %v281, %v282
      %291 = vadd.xlane.f32.xlu0 %v290
      %v292 = vpop.xlane.xlu0 %291
      %v293 = vadd.f32 %v283, %v284
      %294 = vadd.xlane.f32.xlu0 %v293
      %v295 = vpop.xlane.xlu0 %294
      %v296 = vadd.f32 %v285, %v286
      %297 = vadd.xlane.f32.xlu0 %v296
      %v298 = vpop.xlane.xlu0 %297
      %v299 = vrcp.pop 256.0
      %v300 = vmul.f32 %v289, %v299
      %v301 = vmul.f32 %v292, %v299
      %v302 = vmul.f32 %v295, %v299
      %v303 = vmul.f32 %v298, %v299
      %v304 = vmax.f32 %v279, %v280
      %305 = vmax.xlane.f32.xlu0 %v304
      %v306 = vpop.xlane.xlu0 %305
      %v307 = vmax.f32 %v281, %v282
      %308 = vmax.xlane.f32.xlu0 %v307
      %v309 = vpop.xlane.xlu0 %308
      %v310 = vmax.f32 %v283, %v284
      %311 = vmax.xlane.f32.xlu0 %v310
      %v312 = vpop.xlane.xlu0 %311
      %v313 = vmax.f32 %v285, %v286
      %314 = vmax.xlane.f32.xlu0 %v313
      %v315 = vpop.xlane.xlu0 %314
      %v320 = vlaneseq
      %v321 = vand.u32 %v320, 127
      %v322 = vlaneseq
      %v323 = vshrl.u32 %v322, 7
      %v324 = vsub.s32 %v321, %v323
      %v325 = vrot.slane %v300, %v324
      %v326 = vadd.s32 %v321, 4294967288
      %v327 = vlaneseq
      %v328 = vshrl.u32 %v327, 7
      %v329 = vsub.s32 %v326, %v328
      %v330 = vrot.slane %v301, %v329
      %vm331 = vcmask 130112
      %v332 = vsel %vm331, %v330, %v325
      %v333 = vadd.s32 %v321, 4294967280
      %v334 = vlaneseq
      %v335 = vshrl.u32 %v334, 7
      %v336 = vsub.s32 %v333, %v335
      %v337 = vrot.slane %v302, %v336
      %vm338 = vcmask 195712
      %v339 = vsel %vm338, %v337, %v332
      %v340 = vadd.s32 %v321, 4294967272
      %v341 = vlaneseq
      %v342 = vshrl.u32 %v341, 7
      %v343 = vsub.s32 %v340, %v342
      %v344 = vrot.slane %v303, %v343
      %vm345 = vcmask 261312
      %v346 = vsel %vm345, %v344, %v339
      %v352 = vlaneseq
      %v353 = vshrl.u32 %v352, 7
      %v354 = vsub.s32 %v321, %v353
      %v355 = vrot.slane %v306, %v354
      %v356 = vlaneseq
      %v357 = vshrl.u32 %v356, 7
      %v358 = vsub.s32 %v326, %v357
      %v359 = vrot.slane %v309, %v358
      %v360 = vsel %vm331, %v359, %v355
      %v361 = vlaneseq
      %v362 = vshrl.u32 %v361, 7
      %v363 = vsub.s32 %v333, %v362
      %v364 = vrot.slane %v312, %v363
      %v365 = vsel %vm338, %v364, %v360
      %v366 = vlaneseq
      %v367 = vshrl.u32 %v366, 7
      %v368 = vsub.s32 %v340, %v367
      %v369 = vrot.slane %v315, %v368
      %v370 = vsel %vm345, %v369, %v365
      %vm372 = vcmask 1040384
      %v373 = vsel %vm372, %v346, %v370
      %v374 = vld [vmem:[%s1] sm:$0xff]
      %v375 = vld [vmem:[%s1 + $0x8] sm:$0xff]
      %v376 = vld [vmem:[%s1 + $0x10] sm:$0xff]
      %v377 = vld [vmem:[%s1 + $0x18] sm:$0xff]
      %v378 = vld [vmem:[%s2] sm:$0x1]
      %v380 = vlaneseq
      %v381 = vshrl.u32 %v380, 7
      %v382 = vsub.s32 0, %v381
      %v383 = vrot.slane %v378, %v382
      %vm385 = vcmask 261120
      %v387 = vsel %vm385, %v373, 0
      %389 = vmatprep.subr.mxu0 0.0
      %390 = vmatpush1.msra.mxu0 0.0
      %391 = vmatprep.subr.mxu0 0.0
      %392 = vmatpush1.msra.mxu0 0.0
      %393 = vmatprep.subr.mxu0 0.0
      %394 = vmatpush1.msra.mxu0 0.0
      %395 = vmatprep.subr.mxu0 0.0
      %396 = vmatpush1.msra.mxu0 0.0
      %397 = vmatprep.subr.mxu0 0.0
      %398 = vmatpush1.msra.mxu0 0.0
      %399 = vmatprep.subr.mxu0 0.0
      %400 = vmatpush1.msra.mxu0 0.0
      %401 = vmatprep.subr.mxu0 0.0
      %402 = vmatpush1.msra.mxu0 0.0
      %403 = vmatprep.subr.mxu0 0.0
      %404 = vmatpush1.msra.mxu0 0.0
      %405 = vmatprep.subr.mxu0 0.0
      %406 = vmatpush1.msra.mxu0 0.0
      %407 = vmatprep.subr.mxu0 0.0
      %408 = vmatpush1.msra.mxu0 0.0
      %409 = vmatprep.subr.mxu0 0.0
      %410 = vmatpush1.msra.mxu0 0.0
      %411 = vmatprep.subr.mxu0 0.0
      %412 = vmatpush1.msra.mxu0 0.0
      %413 = vmatprep.subr.mxu0 0.0
      %414 = vmatpush1.msra.mxu0 %v377
      %415 = vmatprep.subr.mxu0 0.0
      %416 = vmatpush1.msra.mxu0 %v376
      %417 = vmatprep.subr.mxu0 0.0
      %418 = vmatpush1.msra.mxu0 %v375
      %419 = vmatprep.subr.mxu0 0.0
      %420 = vmatpush1.msra.mxu0 %v374
      %421 = vmatprep.subr.mxu0 0.0
      %422 = vmatpush2.msra.mxu0 0.0
      %423 = vmatprep.subr.mxu0 0.0
      %424 = vmatpush2.msra.mxu0 0.0
      %425 = vmatprep.subr.mxu0 0.0
      %426 = vmatpush2.msra.mxu0 0.0
      %427 = vmatprep.subr.mxu0 0.0
      %428 = vmatpush2.msra.mxu0 0.0
      %429 = vmatprep.subr.mxu0 0.0
      %430 = vmatpush2.msra.mxu0 0.0
      %431 = vmatprep.subr.mxu0 0.0
      %432 = vmatpush2.msra.mxu0 0.0
      %433 = vmatprep.subr.mxu0 0.0
      %434 = vmatpush2.msra.mxu0 0.0
      %435 = vmatprep.subr.mxu0 0.0
      %436 = vmatpush2.msra.mxu0 0.0
      %437 = vmatprep.subr.mxu0 0.0
      %438 = vmatpush2.msra.mxu0 0.0
      %439 = vmatprep.subr.mxu0 0.0
      %440 = vmatpush2.msra.mxu0 0.0
      %441 = vmatprep.subr.mxu0 0.0
      %442 = vmatpush2.msra.mxu0 0.0
      %443 = vmatprep.subr.mxu0 0.0
      %444 = vmatpush2.msra.mxu0 0.0
      %445 = vmatprep.subr.mxu0 0.0
      %446 = vmatpush2.msra.mxu0 0.0
      %447 = vmatprep.subr.mxu0 0.0
      %448 = vmatpush2.msra.mxu0 0.0
      %449 = vmatprep.subr.mxu0 0.0
      %450 = vmatpush2.msra.mxu0 0.0
      %451 = vmatprep.subr.mxu0 0.0
      %452 = vmatpush2.msra.mxu0 0.0
      %453 = vmatprep.mubr.f32.mxu0 0.0
      %454 = vmatmul.mubr.f32.gmra.mxu0 %v387
      %v455 = vpop.f32.mrf.mxu0
      %v456 = vadd.f32 %v383, %v455
      %v457 = vpop.f32.mrf.mxu0
      %458 = vdwg.mxu0
      %v459 = vmax.f32 %v456, 0.0
      %v460 = vld [vmem:[%s3] sm:$0xf]
      %v461 = vld [vmem:[%s4] sm:$0x1]
      %v463 = vlaneseq
      %v464 = vshrl.u32 %v463, 7
      %v465 = vsub.s32 0, %v464
      %v466 = vrot.slane %v461, %v465
      %vm468 = vcmask 31744
      %v470 = vsel %vm468, %v459, 0
      %vm472 = vcmask 1043456
      %v474 = vsel %vm472, %v460, 0
      %476 = vmatprep.subr.mxu0 0.0
      %477 = vmatpush1.msra.mxu0 0.0
      %478 = vmatprep.subr.mxu0 0.0
      %479 = vmatpush1.msra.mxu0 0.0
      %480 = vmatprep.subr.mxu0 0.0
      %481 = vmatpush1.msra.mxu0 0.0
      %482 = vmatprep.subr.mxu0 0.0
      %483 = vmatpush1.msra.mxu0 0.0
      %484 = vmatprep.subr.mxu0 0.0
      %485 = vmatpush1.msra.mxu0 0.0
      %486 = vmatprep.subr.mxu0 0.0
      %487 = vmatpush1.msra.mxu0 0.0
      %488 = vmatprep.subr.mxu0 0.0
      %489 = vmatpush1.msra.mxu0 0.0
      %490 = vmatprep.subr.mxu0 0.0
      %491 = vmatpush1.msra.mxu0 0.0
      %492 = vmatprep.subr.mxu0 0.0
      %493 = vmatpush1.msra.mxu0 0.0
      %494 = vmatprep.subr.mxu0 0.0
      %495 = vmatpush1.msra.mxu0 0.0
      %496 = vmatprep.subr.mxu0 0.0
      %497 = vmatpush1.msra.mxu0 0.0
      %498 = vmatprep.subr.mxu0 0.0
      %499 = vmatpush1.msra.mxu0 0.0
      %500 = vmatprep.subr.mxu0 0.0
      %501 = vmatpush1.msra.mxu0 0.0
      %502 = vmatprep.subr.mxu0 0.0
      %503 = vmatpush1.msra.mxu0 0.0
      %504 = vmatprep.subr.mxu0 0.0
      %505 = vmatpush1.msra.mxu0 0.0
      %506 = vmatprep.subr.mxu0 0.0
      %507 = vmatpush1.msra.mxu0 %v474
      %508 = vmatprep.subr.mxu0 0.0
      %509 = vmatpush2.msra.mxu0 0.0
      %510 = vmatprep.subr.mxu0 0.0
      %511 = vmatpush2.msra.mxu0 0.0
      %512 = vmatprep.subr.mxu0 0.0
      %513 = vmatpush2.msra.mxu0 0.0
      %514 = vmatprep.subr.mxu0 0.0
      %515 = vmatpush2.msra.mxu0 0.0
      %516 = vmatprep.subr.mxu0 0.0
      %517 = vmatpush2.msra.mxu0 0.0
      %518 = vmatprep.subr.mxu0 0.0
      %519 = vmatpush2.msra.mxu0 0.0
      %520 = vmatprep.subr.mxu0 0.0
      %521 = vmatpush2.msra.mxu0 0.0
      %522 = vmatprep.subr.mxu0 0.0
      %523 = vmatpush2.msra.mxu0 0.0
      %524 = vmatprep.subr.mxu0 0.0
      %525 = vmatpush2.msra.mxu0 0.0
      %526 = vmatprep.subr.mxu0 0.0
      %527 = vmatpush2.msra.mxu0 0.0
      %528 = vmatprep.subr.mxu0 0.0
      %529 = vmatpush2.msra.mxu0 0.0
      %530 = vmatprep.subr.mxu0 0.0
      %531 = vmatpush2.msra.mxu0 0.0
      %532 = vmatprep.subr.mxu0 0.0
      %533 = vmatpush2.msra.mxu0 0.0
      %534 = vmatprep.subr.mxu0 0.0
      %535 = vmatpush2.msra.mxu0 0.0
      %536 = vmatprep.subr.mxu0 0.0
      %537 = vmatpush2.msra.mxu0 0.0
      %538 = vmatprep.subr.mxu0 0.0
      %539 = vmatpush2.msra.mxu0 0.0
      %540 = vmatprep.mubr.f32.mxu0 0.0
      %541 = vmatmul.mubr.f32.gmra.mxu0 %v470
      %v542 = vpop.f32.mrf.mxu0
      %v543 = vadd.f32 %v466, %v542
      %v544 = vpop.f32.mrf.mxu0
      %545 = vdwg.mxu0
      %v547 = vrot.slane %v543, 1
      %v549 = vadd.f32 %v543, %v547
      %v550 = vxor.u32 %v549, 2147483648
      %v551 = vmul.f32 %v550, 1.442695
      %v552 = vpow.pop %v551
      %v553 = vadd.f32 %v552, 1.0
      %v554 = vrcp.pop %v553
      %v555 = vmul.f32 1.0, %v554
      %v556 = vlaneseq
      %v557 = vshrl.u32 %v556, 7
      %v558 = vsub.s32 0, %v557
      %v559 = vrot.slane %v555, %v558
      %561 = vbcast.lane.b32.xlu0 %v559, 256
      %v562 = vpop.permute.xlu0 %561
      %s564 = sor.u32 256, 8
      %565 = vbcast.lane.b32.xlu0 %v559, %s564
      %v566 = vpop.permute.xlu0 %565
      %s568 = sor.u32 256, 16
      %569 = vbcast.lane.b32.xlu0 %v559, %s568
      %v570 = vpop.permute.xlu0 %569
      %s572 = sor.u32 256, 24
      %573 = vbcast.lane.b32.xlu0 %v559, %s572
      %v574 = vpop.permute.xlu0 %573
      %v575 = vmul.f32 %v279, %v562
      %v576 = vmul.f32 %v280, %v562
      %v577 = vmul.f32 %v281, %v566
      %v578 = vmul.f32 %v282, %v566
      %v579 = vmul.f32 %v283, %v570
      %v580 = vmul.f32 %v284, %v570
      %v581 = vmul.f32 %v285, %v574
      %v582 = vmul.f32 %v286, %v574
      %v583 = vmax.f32 %v279, %v283
      %v584 = vmax.f32 %v281, %v285
      %v585 = vmax.f32 %v583, %v584
      %v586 = vrot.slane %v585, 4
      %v587 = vmax.f32 %v585, %v586
      %v588 = vrot.slane %v587, 2
      %v589 = vmax.f32 %v587, %v588
      %v590 = vrot.slane %v589, 1
      %v591 = vmax.f32 %v589, %v590
      %v592 = vmax.f32 %v280, %v284
      %v593 = vmax.f32 %v282, %v286
      %v594 = vmax.f32 %v592, %v593
      %v595 = vrot.slane %v594, 4
      %v596 = vmax.f32 %v594, %v595
      %v597 = vrot.slane %v596, 2
      %v598 = vmax.f32 %v596, %v597
      %v599 = vrot.slane %v598, 1
      %v600 = vmax.f32 %v598, %v599
      %v601 = vadd.f32 %v279, %v281
      %v602 = vadd.f32 %v601, %v283
      %v603 = vadd.f32 %v602, %v285
      %v604 = vrot.slane %v603, 4
      %v605 = vadd.f32 %v603, %v604
      %v606 = vrot.slane %v605, 2
      %v607 = vadd.f32 %v605, %v606
      %v608 = vrot.slane %v607, 1
      %v609 = vadd.f32 %v607, %v608
      %v610 = vadd.f32 %v280, %v282
      %v611 = vadd.f32 %v610, %v284
      %v612 = vadd.f32 %v611, %v286
      %v613 = vrot.slane %v612, 4
      %v614 = vadd.f32 %v612, %v613
      %v615 = vrot.slane %v614, 2
      %v616 = vadd.f32 %v614, %v615
      %v617 = vrot.slane %v616, 1
      %v618 = vadd.f32 %v616, %v617
      %v619 = vrcp.pop 32.0
      %v620 = vmul.f32 %v609, %v619
      %v621 = vmul.f32 %v618, %v619
      %624 = vrot.lane.b32.xlu0 %v591, 51
      %v625 = vpop.permute.xlu0 %624
      %626 = vrot.lane.b32.xlu0 %v600, 51
      %v627 = vpop.permute.xlu0 %626
      %vm628 = vcmask 416768
      %v629 = vsel %vm628, %v625, %v627
      %v633 = vsel %vm628, 0.0, %v625
      %v634 = vsel %vm628, %v627, 0.0
      %637 = vrot.lane.b32.xlu0 %v620, 51
      %v638 = vpop.permute.xlu0 %637
      %639 = vrot.lane.b32.xlu0 %v621, 51
      %v640 = vpop.permute.xlu0 %639
      %v641 = vsel %vm628, %v638, %v640
      %v645 = vsel %vm628, 0.0, %v638
      %v646 = vsel %vm628, %v640, 0.0
      %v647 = vld [vmem:[%s5] sm:$0xff]
      %v648 = vld [vmem:[%s5 + $0x8] sm:$0xff]
      %v649 = vld [vmem:[%s5 + $0x10] sm:$0xff]
      %v650 = vld [vmem:[%s5 + $0x18] sm:$0xff]
      %v651 = vld [vmem:[%s5 + $0x20] sm:$0xff]
      %v652 = vld [vmem:[%s5 + $0x28] sm:$0xff]
      %v653 = vld [vmem:[%s5 + $0x30] sm:$0xff]
      %v654 = vld [vmem:[%s5 + $0x38] sm:$0xff]
      %v655 = vld [vmem:[%s5 + $0x40] sm:$0xff]
      %v656 = vld [vmem:[%s5 + $0x48] sm:$0xff]
      %v657 = vld [vmem:[%s5 + $0x50] sm:$0xff]
      %v658 = vld [vmem:[%s5 + $0x58] sm:$0xff]
      %v659 = vld [vmem:[%s5 + $0x60] sm:$0x1]
      %v660 = vld [vmem:[%s5 + $0x68] sm:$0x1]
      %v661 = vld [vmem:[%s6] sm:$0xff]
      %v662 = vld [vmem:[%s6 + $0x8] sm:$0xff]
      %v663 = vld [vmem:[%s6 + $0x10] sm:$0xff]
      %v664 = vld [vmem:[%s6 + $0x18] sm:$0xff]
      %v665 = vld [vmem:[%s6 + $0x20] sm:$0xff]
      %v666 = vld [vmem:[%s6 + $0x28] sm:$0xff]
      %v667 = vld [vmem:[%s6 + $0x30] sm:$0xff]
      %v668 = vld [vmem:[%s6 + $0x38] sm:$0xff]
      %v669 = vld [vmem:[%s6 + $0x40] sm:$0xff]
      %v670 = vld [vmem:[%s6 + $0x48] sm:$0xff]
      %v671 = vld [vmem:[%s6 + $0x50] sm:$0xff]
      %v672 = vld [vmem:[%s6 + $0x58] sm:$0xff]
      %v673 = vld [vmem:[%s6 + $0x60] sm:$0x1]
      %v674 = vld [vmem:[%s6 + $0x68] sm:$0x1]
      %v675 = vmul.f32 %v647, %v633
      %v676 = vmul.f32 %v648, %v629
      %v677 = vmul.f32 %v661, %v645
      %v678 = vmul.f32 %v662, %v641
      %v679 = vadd.f32 %v675, %v677
      %v680 = vadd.f32 %v676, %v678
      %v681 = vadd.f32 %v679, 0.0
      %v682 = vadd.f32 %v680, 0.0
      %v685 = vrot.slane %v633, 7
      %v686 = vrot.slane %v629, 7
      %v687 = vrot.slane %v634, 7
      %688 = vrot.lane.b32.xlu0 %v685, 127
      %v689 = vpop.permute.xlu0 %688
      %690 = vrot.lane.b32.xlu0 %v686, 127
      %v691 = vpop.permute.xlu0 %690
      %692 = vrot.lane.b32.xlu0 %v687, 127
      %v693 = vpop.permute.xlu0 %692
      %vm694 = vcmask 1039360
      %v695 = vsel %vm694, %v689, %v691
      %v696 = vsel %vm694, %v691, %v693
      %v699 = vmul.f32 %v647, %v695
      %v700 = vmul.f32 %v648, %v696
      %v703 = vrot.slane %v645, 7
      %v704 = vrot.slane %v641, 7
      %v705 = vrot.slane %v646, 7
      %706 = vrot.lane.b32.xlu0 %v703, 127
      %v707 = vpop.permute.xlu0 %706
      %708 = vrot.lane.b32.xlu0 %v704, 127
      %v709 = vpop.permute.xlu0 %708
      %710 = vrot.lane.b32.xlu0 %v705, 127
      %v711 = vpop.permute.xlu0 %710
      %v712 = vsel %vm694, %v707, %v709
      %v713 = vsel %vm694, %v709, %v711
      %v716 = vmul.f32 %v661, %v712
      %v717 = vmul.f32 %v662, %v713
      %v718 = vadd.f32 %v699, %v716
      %v719 = vadd.f32 %v700, %v717
      %v722 = vrot.slane %v718, 1
      %v723 = vrot.slane %v719, 1
      %v726 = vadd.f32 %v681, %v722
      %v727 = vadd.f32 %v682, %v723
      %v728 = vrot.slane %v633, 6
      %v729 = vrot.slane %v629, 6
      %v730 = vrot.slane %v634, 6
      %731 = vrot.lane.b32.xlu0 %v728, 126
      %v732 = vpop.permute.xlu0 %731
      %733 = vrot.lane.b32.xlu0 %v729, 126
      %v734 = vpop.permute.xlu0 %733
      %735 = vrot.lane.b32.xlu0 %v730, 126
      %v736 = vpop.permute.xlu0 %735
      %vm737 = vcmask 1031168
      %v738 = vsel %vm737, %v732, %v734
      %v739 = vsel %vm737, %v734, %v736
      %v742 = vmul.f32 %v647, %v738
      %v743 = vmul.f32 %v648, %v739
      %v744 = vrot.slane %v645, 6
      %v745 = vrot.slane %v641, 6
      %v746 = vrot.slane %v646, 6
      %747 = vrot.lane.b32.xlu0 %v744, 126
      %v748 = vpop.permute.xlu0 %747
      %749 = vrot.lane.b32.xlu0 %v745, 126
      %v750 = vpop.permute.xlu0 %749
      %751 = vrot.lane.b32.xlu0 %v746, 126
      %v752 = vpop.permute.xlu0 %751
      %v753 = vsel %vm737, %v748, %v750
      %v754 = vsel %vm737, %v750, %v752
      %v757 = vmul.f32 %v661, %v753
      %v758 = vmul.f32 %v662, %v754
      %v759 = vadd.f32 %v742, %v757
      %v760 = vadd.f32 %v743, %v758
      %v763 = vrot.slane %v759, 2
      %v764 = vrot.slane %v760, 2
      %v767 = vadd.f32 %v726, %v763
      %v768 = vadd.f32 %v727, %v764
      %v769 = vrot.slane %v633, 5
      %v770 = vrot.slane %v629, 5
      %v771 = vrot.slane %v634, 5
      %772 = vrot.lane.b32.xlu0 %v769, 125
      %v773 = vpop.permute.xlu0 %772
      %774 = vrot.lane.b32.xlu0 %v770, 125
      %v775 = vpop.permute.xlu0 %774
      %776 = vrot.lane.b32.xlu0 %v771, 125
      %v777 = vpop.permute.xlu0 %776
      %vm778 = vcmask 1022976
      %v779 = vsel %vm778, %v773, %v775
      %v780 = vsel %vm778, %v775, %v777
      %v783 = vmul.f32 %v647, %v779
      %v784 = vmul.f32 %v648, %v780
      %v785 = vrot.slane %v645, 5
      %v786 = vrot.slane %v641, 5
      %v787 = vrot.slane %v646, 5
      %788 = vrot.lane.b32.xlu0 %v785, 125
      %v789 = vpop.permute.xlu0 %788
      %790 = vrot.lane.b32.xlu0 %v786, 125
      %v791 = vpop.permute.xlu0 %790
      %792 = vrot.lane.b32.xlu0 %v787, 125
      %v793 = vpop.permute.xlu0 %792
      %v794 = vsel %vm778, %v789, %v791
      %v795 = vsel %vm778, %v791, %v793
      %v798 = vmul.f32 %v661, %v794
      %v799 = vmul.f32 %v662, %v795
      %v800 = vadd.f32 %v783, %v798
      %v801 = vadd.f32 %v784, %v799
      %v804 = vrot.slane %v800, 3
      %v805 = vrot.slane %v801, 3
      %v808 = vadd.f32 %v767, %v804
      %v809 = vadd.f32 %v768, %v805
      %v810 = vrot.slane %v633, 4
      %v811 = vrot.slane %v629, 4
      %v812 = vrot.slane %v634, 4
      %813 = vrot.lane.b32.xlu0 %v810, 124
      %v814 = vpop.permute.xlu0 %813
      %815 = vrot.lane.b32.xlu0 %v811, 124
      %v816 = vpop.permute.xlu0 %815
      %817 = vrot.lane.b32.xlu0 %v812, 124
      %v818 = vpop.permute.xlu0 %817
      %vm819 = vcmask 1014784
      %v820 = vsel %vm819, %v814, %v816
      %v821 = vsel %vm819, %v816, %v818
      %v824 = vmul.f32 %v647, %v820
      %v825 = vmul.f32 %v648, %v821
      %v826 = vrot.slane %v645, 4
      %v827 = vrot.slane %v641, 4
      %v828 = vrot.slane %v646, 4
      %829 = vrot.lane.b32.xlu0 %v826, 124
      %v830 = vpop.permute.xlu0 %829
      %831 = vrot.lane.b32.xlu0 %v827, 124
      %v832 = vpop.permute.xlu0 %831
      %833 = vrot.lane.b32.xlu0 %v828, 124
      %v834 = vpop.permute.xlu0 %833
      %v835 = vsel %vm819, %v830, %v832
      %v836 = vsel %vm819, %v832, %v834
      %v839 = vmul.f32 %v661, %v835
      %v840 = vmul.f32 %v662, %v836
      %v841 = vadd.f32 %v824, %v839
      %v842 = vadd.f32 %v825, %v840
      %v845 = vrot.slane %v841, 4
      %v846 = vrot.slane %v842, 4
      %v849 = vadd.f32 %v808, %v845
      %v850 = vadd.f32 %v809, %v846
      %v851 = vrot.slane %v633, 3
      %v852 = vrot.slane %v629, 3
      %v853 = vrot.slane %v634, 3
      %854 = vrot.lane.b32.xlu0 %v851, 123
      %v855 = vpop.permute.xlu0 %854
      %856 = vrot.lane.b32.xlu0 %v852, 123
      %v857 = vpop.permute.xlu0 %856
      %858 = vrot.lane.b32.xlu0 %v853, 123
      %v859 = vpop.permute.xlu0 %858
      %vm860 = vcmask 1006592
      %v861 = vsel %vm860, %v855, %v857
      %v862 = vsel %vm860, %v857, %v859
      %v865 = vmul.f32 %v647, %v861
      %v866 = vmul.f32 %v648, %v862
      %v867 = vrot.slane %v645, 3
      %v868 = vrot.slane %v641, 3
      %v869 = vrot.slane %v646, 3
      %870 = vrot.lane.b32.xlu0 %v867, 123
      %v871 = vpop.permute.xlu0 %870
      %872 = vrot.lane.b32.xlu0 %v868, 123
      %v873 = vpop.permute.xlu0 %872
      %874 = vrot.lane.b32.xlu0 %v869, 123
      %v875 = vpop.permute.xlu0 %874
      %v876 = vsel %vm860, %v871, %v873
      %v877 = vsel %vm860, %v873, %v875
      %v880 = vmul.f32 %v661, %v876
      %v881 = vmul.f32 %v662, %v877
      %v882 = vadd.f32 %v865, %v880
      %v883 = vadd.f32 %v866, %v881
      %v886 = vrot.slane %v882, 5
      %v887 = vrot.slane %v883, 5
      %v890 = vadd.f32 %v849, %v886
      %v891 = vadd.f32 %v850, %v887
      %v892 = vrot.slane %v633, 2
      %v893 = vrot.slane %v629, 2
      %v894 = vrot.slane %v634, 2
      %895 = vrot.lane.b32.xlu0 %v892, 122
      %v896 = vpop.permute.xlu0 %895
      %897 = vrot.lane.b32.xlu0 %v893, 122
      %v898 = vpop.permute.xlu0 %897
      %899 = vrot.lane.b32.xlu0 %v894, 122
      %v900 = vpop.permute.xlu0 %899
      %vm901 = vcmask 998400
      %v902 = vsel %vm901, %v896, %v898
      %v903 = vsel %vm901, %v898, %v900
      %v906 = vmul.f32 %v647, %v902
      %v907 = vmul.f32 %v648, %v903
      %v908 = vrot.slane %v645, 2
      %v909 = vrot.slane %v641, 2
      %v910 = vrot.slane %v646, 2
      %911 = vrot.lane.b32.xlu0 %v908, 122
      %v912 = vpop.permute.xlu0 %911
      %913 = vrot.lane.b32.xlu0 %v909, 122
      %v914 = vpop.permute.xlu0 %913
      %915 = vrot.lane.b32.xlu0 %v910, 122
      %v916 = vpop.permute.xlu0 %915
      %v917 = vsel %vm901, %v912, %v914
      %v918 = vsel %vm901, %v914, %v916
      %v921 = vmul.f32 %v661, %v917
      %v922 = vmul.f32 %v662, %v918
      %v923 = vadd.f32 %v906, %v921
      %v924 = vadd.f32 %v907, %v922
      %v927 = vrot.slane %v923, 6
      %v928 = vrot.slane %v924, 6
      %v931 = vadd.f32 %v890, %v927
      %v932 = vadd.f32 %v891, %v928
      %v933 = vrot.slane %v633, 1
      %v934 = vrot.slane %v629, 1
      %v935 = vrot.slane %v634, 1
      %936 = vrot.lane.b32.xlu0 %v933, 112
      %v937 = vpop.permute.xlu0 %936
      %938 = vrot.lane.b32.xlu0 %v934, 112
      %v939 = vpop.permute.xlu0 %938
      %940 = vrot.lane.b32.xlu0 %v935, 112
      %v941 = vpop.permute.xlu0 %940
      %vm942 = vcmask 916480
      %v943 = vsel %vm942, %v937, %v939
      %v944 = vsel %vm942, %v939, %v941
      %v947 = vmul.f32 %v647, %v943
      %v948 = vmul.f32 %v648, %v944
      %v949 = vrot.slane %v645, 1
      %v950 = vrot.slane %v641, 1
      %v951 = vrot.slane %v646, 1
      %952 = vrot.lane.b32.xlu0 %v949, 112
      %v953 = vpop.permute.xlu0 %952
      %954 = vrot.lane.b32.xlu0 %v950, 112
      %v955 = vpop.permute.xlu0 %954
      %956 = vrot.lane.b32.xlu0 %v951, 112
      %v957 = vpop.permute.xlu0 %956
      %v958 = vsel %vm942, %v953, %v955
      %v959 = vsel %vm942, %v955, %v957
      %v962 = vmul.f32 %v661, %v958
      %v963 = vmul.f32 %v662, %v959
      %v964 = vadd.f32 %v947, %v962
      %v965 = vadd.f32 %v948, %v963
      %v968 = vrot.slane %v964, 7
      %v969 = vrot.slane %v965, 7
      %v972 = vadd.f32 %v931, %v968
      %v973 = vadd.f32 %v932, %v969
      %974 = vrot.lane.b32.xlu0 %v633, 111
      %v975 = vpop.permute.xlu0 %974
      %976 = vrot.lane.b32.xlu0 %v629, 111
      %v977 = vpop.permute.xlu0 %976
      %978 = vrot.lane.b32.xlu0 %v634, 111
      %v979 = vpop.permute.xlu0 %978
      %vm980 = vcmask 908288
      %v981 = vsel %vm980, %v975, %v977
      %v982 = vsel %vm980, %v977, %v979
      %v985 = vmul.f32 %v649, %v981
      %v986 = vmul.f32 %v650, %v982
      %987 = vrot.lane.b32.xlu0 %v645, 111
      %v988 = vpop.permute.xlu0 %987
      %989 = vrot.lane.b32.xlu0 %v641, 111
      %v990 = vpop.permute.xlu0 %989
      %991 = vrot.lane.b32.xlu0 %v646, 111
      %v992 = vpop.permute.xlu0 %991
      %v993 = vsel %vm980, %v988, %v990
      %v994 = vsel %vm980, %v990, %v992
      %v997 = vmul.f32 %v663, %v993
      %v998 = vmul.f32 %v664, %v994
      %v999 = vadd.f32 %v985, %v997
      %v1000 = vadd.f32 %v986, %v998
      %v1001 = vadd.f32 %v972, %v999
      %v1002 = vadd.f32 %v973, %v1000
      %1003 = vrot.lane.b32.xlu0 %v685, 110
      %v1004 = vpop.permute.xlu0 %1003
      %1005 = vrot.lane.b32.xlu0 %v686, 110
      %v1006 = vpop.permute.xlu0 %1005
      %1007 = vrot.lane.b32.xlu0 %v687, 110
      %v1008 = vpop.permute.xlu0 %1007
      %vm1009 = vcmask 900096
      %v1010 = vsel %vm1009, %v1004, %v1006
      %v1011 = vsel %vm1009, %v1006, %v1008
      %v1014 = vmul.f32 %v649, %v1010
      %v1015 = vmul.f32 %v650, %v1011
      %1016 = vrot.lane.b32.xlu0 %v703, 110
      %v1017 = vpop.permute.xlu0 %1016
      %1018 = vrot.lane.b32.xlu0 %v704, 110
      %v1019 = vpop.permute.xlu0 %1018
      %1020 = vrot.lane.b32.xlu0 %v705, 110
      %v1021 = vpop.permute.xlu0 %1020
      %v1022 = vsel %vm1009, %v1017, %v1019
      %v1023 = vsel %vm1009, %v1019, %v1021
      %v1026 = vmul.f32 %v663, %v1022
      %v1027 = vmul.f32 %v664, %v1023
      %v1028 = vadd.f32 %v1014, %v1026
      %v1029 = vadd.f32 %v1015, %v1027
      %v1032 = vrot.slane %v1028, 1
      %v1033 = vrot.slane %v1029, 1
      %v1036 = vadd.f32 %v1001, %v1032
      %v1037 = vadd.f32 %v1002, %v1033
      %1038 = vrot.lane.b32.xlu0 %v728, 109
      %v1039 = vpop.permute.xlu0 %1038
      %1040 = vrot.lane.b32.xlu0 %v729, 109
      %v1041 = vpop.permute.xlu0 %1040
      %1042 = vrot.lane.b32.xlu0 %v730, 109
      %v1043 = vpop.permute.xlu0 %1042
      %vm1044 = vcmask 891904
      %v1045 = vsel %vm1044, %v1039, %v1041
      %v1046 = vsel %vm1044, %v1041, %v1043
      %v1049 = vmul.f32 %v649, %v1045
      %v1050 = vmul.f32 %v650, %v1046
      %1051 = vrot.lane.b32.xlu0 %v744, 109
      %v1052 = vpop.permute.xlu0 %1051
      %1053 = vrot.lane.b32.xlu0 %v745, 109
      %v1054 = vpop.permute.xlu0 %1053
      %1055 = vrot.lane.b32.xlu0 %v746, 109
      %v1056 = vpop.permute.xlu0 %1055
      %v1057 = vsel %vm1044, %v1052, %v1054
      %v1058 = vsel %vm1044, %v1054, %v1056
      %v1061 = vmul.f32 %v663, %v1057
      %v1062 = vmul.f32 %v664, %v1058
      %v1063 = vadd.f32 %v1049, %v1061
      %v1064 = vadd.f32 %v1050, %v1062
      %v1067 = vrot.slane %v1063, 2
      %v1068 = vrot.slane %v1064, 2
      %v1071 = vadd.f32 %v1036, %v1067
      %v1072 = vadd.f32 %v1037, %v1068
      %1073 = vrot.lane.b32.xlu0 %v769, 108
      %v1074 = vpop.permute.xlu0 %1073
      %1075 = vrot.lane.b32.xlu0 %v770, 108
      %v1076 = vpop.permute.xlu0 %1075
      %1077 = vrot.lane.b32.xlu0 %v771, 108
      %v1078 = vpop.permute.xlu0 %1077
      %vm1079 = vcmask 883712
      %v1080 = vsel %vm1079, %v1074, %v1076
      %v1081 = vsel %vm1079, %v1076, %v1078
      %v1084 = vmul.f32 %v649, %v1080
      %v1085 = vmul.f32 %v650, %v1081
      %1086 = vrot.lane.b32.xlu0 %v785, 108
      %v1087 = vpop.permute.xlu0 %1086
      %1088 = vrot.lane.b32.xlu0 %v786, 108
      %v1089 = vpop.permute.xlu0 %1088
      %1090 = vrot.lane.b32.xlu0 %v787, 108
      %v1091 = vpop.permute.xlu0 %1090
      %v1092 = vsel %vm1079, %v1087, %v1089
      %v1093 = vsel %vm1079, %v1089, %v1091
      %v1096 = vmul.f32 %v663, %v1092
      %v1097 = vmul.f32 %v664, %v1093
      %v1098 = vadd.f32 %v1084, %v1096
      %v1099 = vadd.f32 %v1085, %v1097
      %v1102 = vrot.slane %v1098, 3
      %v1103 = vrot.slane %v1099, 3
      %v1106 = vadd.f32 %v1071, %v1102
      %v1107 = vadd.f32 %v1072, %v1103
      %1108 = vrot.lane.b32.xlu0 %v810, 107
      %v1109 = vpop.permute.xlu0 %1108
      %1110 = vrot.lane.b32.xlu0 %v811, 107
      %v1111 = vpop.permute.xlu0 %1110
      %1112 = vrot.lane.b32.xlu0 %v812, 107
      %v1113 = vpop.permute.xlu0 %1112
      %vm1114 = vcmask 875520
      %v1115 = vsel %vm1114, %v1109, %v1111
      %v1116 = vsel %vm1114, %v1111, %v1113
      %v1119 = vmul.f32 %v649, %v1115
      %v1120 = vmul.f32 %v650, %v1116
      %1121 = vrot.lane.b32.xlu0 %v826, 107
      %v1122 = vpop.permute.xlu0 %1121
      %1123 = vrot.lane.b32.xlu0 %v827, 107
      %v1124 = vpop.permute.xlu0 %1123
      %1125 = vrot.lane.b32.xlu0 %v828, 107
      %v1126 = vpop.permute.xlu0 %1125
      %v1127 = vsel %vm1114, %v1122, %v1124
      %v1128 = vsel %vm1114, %v1124, %v1126
      %v1131 = vmul.f32 %v663, %v1127
      %v1132 = vmul.f32 %v664, %v1128
      %v1133 = vadd.f32 %v1119, %v1131
      %v1134 = vadd.f32 %v1120, %v1132
      %v1137 = vrot.slane %v1133, 4
      %v1138 = vrot.slane %v1134, 4
      %v1141 = vadd.f32 %v1106, %v1137
      %v1142 = vadd.f32 %v1107, %v1138
      %1143 = vrot.lane.b32.xlu0 %v851, 106
      %v1144 = vpop.permute.xlu0 %1143
      %1145 = vrot.lane.b32.xlu0 %v852, 106
      %v1146 = vpop.permute.xlu0 %1145
      %1147 = vrot.lane.b32.xlu0 %v853, 106
      %v1148 = vpop.permute.xlu0 %1147
      %vm1149 = vcmask 867328
      %v1150 = vsel %vm1149, %v1144, %v1146
      %v1151 = vsel %vm1149, %v1146, %v1148
      %v1154 = vmul.f32 %v649, %v1150
      %v1155 = vmul.f32 %v650, %v1151
      %1156 = vrot.lane.b32.xlu0 %v867, 106
      %v1157 = vpop.permute.xlu0 %1156
      %1158 = vrot.lane.b32.xlu0 %v868, 106
      %v1159 = vpop.permute.xlu0 %1158
      %1160 = vrot.lane.b32.xlu0 %v869, 106
      %v1161 = vpop.permute.xlu0 %1160
      %v1162 = vsel %vm1149, %v1157, %v1159
      %v1163 = vsel %vm1149, %v1159, %v1161
      %v1166 = vmul.f32 %v663, %v1162
      %v1167 = vmul.f32 %v664, %v1163
      %v1168 = vadd.f32 %v1154, %v1166
      %v1169 = vadd.f32 %v1155, %v1167
      %v1172 = vrot.slane %v1168, 5
      %v1173 = vrot.slane %v1169, 5
      %v1176 = vadd.f32 %v1141, %v1172
      %v1177 = vadd.f32 %v1142, %v1173
      %1178 = vrot.lane.b32.xlu0 %v892, 96
      %v1179 = vpop.permute.xlu0 %1178
      %1180 = vrot.lane.b32.xlu0 %v893, 96
      %v1181 = vpop.permute.xlu0 %1180
      %1182 = vrot.lane.b32.xlu0 %v894, 96
      %v1183 = vpop.permute.xlu0 %1182
      %vm1184 = vcmask 785408
      %v1185 = vsel %vm1184, %v1179, %v1181
      %v1186 = vsel %vm1184, %v1181, %v1183
      %v1189 = vmul.f32 %v649, %v1185
      %v1190 = vmul.f32 %v650, %v1186
      %1191 = vrot.lane.b32.xlu0 %v908, 96
      %v1192 = vpop.permute.xlu0 %1191
      %1193 = vrot.lane.b32.xlu0 %v909, 96
      %v1194 = vpop.permute.xlu0 %1193
      %1195 = vrot.lane.b32.xlu0 %v910, 96
      %v1196 = vpop.permute.xlu0 %1195
      %v1197 = vsel %vm1184, %v1192, %v1194
      %v1198 = vsel %vm1184, %v1194, %v1196
      %v1201 = vmul.f32 %v663, %v1197
      %v1202 = vmul.f32 %v664, %v1198
      %v1203 = vadd.f32 %v1189, %v1201
      %v1204 = vadd.f32 %v1190, %v1202
      %v1207 = vrot.slane %v1203, 6
      %v1208 = vrot.slane %v1204, 6
      %v1211 = vadd.f32 %v1176, %v1207
      %v1212 = vadd.f32 %v1177, %v1208
      %1213 = vrot.lane.b32.xlu0 %v933, 95
      %v1214 = vpop.permute.xlu0 %1213
      %1215 = vrot.lane.b32.xlu0 %v934, 95
      %v1216 = vpop.permute.xlu0 %1215
      %1217 = vrot.lane.b32.xlu0 %v935, 95
      %v1218 = vpop.permute.xlu0 %1217
      %vm1219 = vcmask 777216
      %v1220 = vsel %vm1219, %v1214, %v1216
      %v1221 = vsel %vm1219, %v1216, %v1218
      %v1224 = vmul.f32 %v649, %v1220
      %v1225 = vmul.f32 %v650, %v1221
      %1226 = vrot.lane.b32.xlu0 %v949, 95
      %v1227 = vpop.permute.xlu0 %1226
      %1228 = vrot.lane.b32.xlu0 %v950, 95
      %v1229 = vpop.permute.xlu0 %1228
      %1230 = vrot.lane.b32.xlu0 %v951, 95
      %v1231 = vpop.permute.xlu0 %1230
      %v1232 = vsel %vm1219, %v1227, %v1229
      %v1233 = vsel %vm1219, %v1229, %v1231
      %v1236 = vmul.f32 %v663, %v1232
      %v1237 = vmul.f32 %v664, %v1233
      %v1238 = vadd.f32 %v1224, %v1236
      %v1239 = vadd.f32 %v1225, %v1237
      %v1242 = vrot.slane %v1238, 7
      %v1243 = vrot.slane %v1239, 7
      %v1246 = vadd.f32 %v1211, %v1242
      %v1247 = vadd.f32 %v1212, %v1243
      %1248 = vrot.lane.b32.xlu0 %v633, 94
      %v1249 = vpop.permute.xlu0 %1248
      %1250 = vrot.lane.b32.xlu0 %v629, 94
      %v1251 = vpop.permute.xlu0 %1250
      %1252 = vrot.lane.b32.xlu0 %v634, 94
      %v1253 = vpop.permute.xlu0 %1252
      %vm1254 = vcmask 769024
      %v1255 = vsel %vm1254, %v1249, %v1251
      %v1256 = vsel %vm1254, %v1251, %v1253
      %v1259 = vmul.f32 %v651, %v1255
      %v1260 = vmul.f32 %v652, %v1256
      %1261 = vrot.lane.b32.xlu0 %v645, 94
      %v1262 = vpop.permute.xlu0 %1261
      %1263 = vrot.lane.b32.xlu0 %v641, 94
      %v1264 = vpop.permute.xlu0 %1263
      %1265 = vrot.lane.b32.xlu0 %v646, 94
      %v1266 = vpop.permute.xlu0 %1265
      %v1267 = vsel %vm1254, %v1262, %v1264
      %v1268 = vsel %vm1254, %v1264, %v1266
      %v1271 = vmul.f32 %v665, %v1267
      %v1272 = vmul.f32 %v666, %v1268
      %v1273 = vadd.f32 %v1259, %v1271
      %v1274 = vadd.f32 %v1260, %v1272
      %v1275 = vadd.f32 %v1246, %v1273
      %v1276 = vadd.f32 %v1247, %v1274
      %1277 = vrot.lane.b32.xlu0 %v685, 93
      %v1278 = vpop.permute.xlu0 %1277
      %1279 = vrot.lane.b32.xlu0 %v686, 93
      %v1280 = vpop.permute.xlu0 %1279
      %1281 = vrot.lane.b32.xlu0 %v687, 93
      %v1282 = vpop.permute.xlu0 %1281
      %vm1283 = vcmask 760832
      %v1284 = vsel %vm1283, %v1278, %v1280
      %v1285 = vsel %vm1283, %v1280, %v1282
      %v1288 = vmul.f32 %v651, %v1284
      %v1289 = vmul.f32 %v652, %v1285
      %1290 = vrot.lane.b32.xlu0 %v703, 93
      %v1291 = vpop.permute.xlu0 %1290
      %1292 = vrot.lane.b32.xlu0 %v704, 93
      %v1293 = vpop.permute.xlu0 %1292
      %1294 = vrot.lane.b32.xlu0 %v705, 93
      %v1295 = vpop.permute.xlu0 %1294
      %v1296 = vsel %vm1283, %v1291, %v1293
      %v1297 = vsel %vm1283, %v1293, %v1295
      %v1300 = vmul.f32 %v665, %v1296
      %v1301 = vmul.f32 %v666, %v1297
      %v1302 = vadd.f32 %v1288, %v1300
      %v1303 = vadd.f32 %v1289, %v1301
      %v1306 = vrot.slane %v1302, 1
      %v1307 = vrot.slane %v1303, 1
      %v1310 = vadd.f32 %v1275, %v1306
      %v1311 = vadd.f32 %v1276, %v1307
      %1312 = vrot.lane.b32.xlu0 %v728, 92
      %v1313 = vpop.permute.xlu0 %1312
      %1314 = vrot.lane.b32.xlu0 %v729, 92
      %v1315 = vpop.permute.xlu0 %1314
      %1316 = vrot.lane.b32.xlu0 %v730, 92
      %v1317 = vpop.permute.xlu0 %1316
      %vm1318 = vcmask 752640
      %v1319 = vsel %vm1318, %v1313, %v1315
      %v1320 = vsel %vm1318, %v1315, %v1317
      %v1323 = vmul.f32 %v651, %v1319
      %v1324 = vmul.f32 %v652, %v1320
      %1325 = vrot.lane.b32.xlu0 %v744, 92
      %v1326 = vpop.permute.xlu0 %1325
      %1327 = vrot.lane.b32.xlu0 %v745, 92
      %v1328 = vpop.permute.xlu0 %1327
      %1329 = vrot.lane.b32.xlu0 %v746, 92
      %v1330 = vpop.permute.xlu0 %1329
      %v1331 = vsel %vm1318, %v1326, %v1328
      %v1332 = vsel %vm1318, %v1328, %v1330
      %v1335 = vmul.f32 %v665, %v1331
      %v1336 = vmul.f32 %v666, %v1332
      %v1337 = vadd.f32 %v1323, %v1335
      %v1338 = vadd.f32 %v1324, %v1336
      %v1341 = vrot.slane %v1337, 2
      %v1342 = vrot.slane %v1338, 2
      %v1345 = vadd.f32 %v1310, %v1341
      %v1346 = vadd.f32 %v1311, %v1342
      %1347 = vrot.lane.b32.xlu0 %v769, 91
      %v1348 = vpop.permute.xlu0 %1347
      %1349 = vrot.lane.b32.xlu0 %v770, 91
      %v1350 = vpop.permute.xlu0 %1349
      %1351 = vrot.lane.b32.xlu0 %v771, 91
      %v1352 = vpop.permute.xlu0 %1351
      %vm1353 = vcmask 744448
      %v1354 = vsel %vm1353, %v1348, %v1350
      %v1355 = vsel %vm1353, %v1350, %v1352
      %v1358 = vmul.f32 %v651, %v1354
      %v1359 = vmul.f32 %v652, %v1355
      %1360 = vrot.lane.b32.xlu0 %v785, 91
      %v1361 = vpop.permute.xlu0 %1360
      %1362 = vrot.lane.b32.xlu0 %v786, 91
      %v1363 = vpop.permute.xlu0 %1362
      %1364 = vrot.lane.b32.xlu0 %v787, 91
      %v1365 = vpop.permute.xlu0 %1364
      %v1366 = vsel %vm1353, %v1361, %v1363
      %v1367 = vsel %vm1353, %v1363, %v1365
      %v1370 = vmul.f32 %v665, %v1366
      %v1371 = vmul.f32 %v666, %v1367
      %v1372 = vadd.f32 %v1358, %v1370
      %v1373 = vadd.f32 %v1359, %v1371
      %v1376 = vrot.slane %v1372, 3
      %v1377 = vrot.slane %v1373, 3
      %v1380 = vadd.f32 %v1345, %v1376
      %v1381 = vadd.f32 %v1346, %v1377
      %1382 = vrot.lane.b32.xlu0 %v810, 90
      %v1383 = vpop.permute.xlu0 %1382
      %1384 = vrot.lane.b32.xlu0 %v811, 90
      %v1385 = vpop.permute.xlu0 %1384
      %1386 = vrot.lane.b32.xlu0 %v812, 90
      %v1387 = vpop.permute.xlu0 %1386
      %vm1388 = vcmask 736256
      %v1389 = vsel %vm1388, %v1383, %v1385
      %v1390 = vsel %vm1388, %v1385, %v1387
      %v1393 = vmul.f32 %v651, %v1389
      %v1394 = vmul.f32 %v652, %v1390
      %1395 = vrot.lane.b32.xlu0 %v826, 90
      %v1396 = vpop.permute.xlu0 %1395
      %1397 = vrot.lane.b32.xlu0 %v827, 90
      %v1398 = vpop.permute.xlu0 %1397
      %1399 = vrot.lane.b32.xlu0 %v828, 90
      %v1400 = vpop.permute.xlu0 %1399
      %v1401 = vsel %vm1388, %v1396, %v1398
      %v1402 = vsel %vm1388, %v1398, %v1400
      %v1405 = vmul.f32 %v665, %v1401
      %v1406 = vmul.f32 %v666, %v1402
      %v1407 = vadd.f32 %v1393, %v1405
      %v1408 = vadd.f32 %v1394, %v1406
      %v1411 = vrot.slane %v1407, 4
      %v1412 = vrot.slane %v1408, 4
      %v1415 = vadd.f32 %v1380, %v1411
      %v1416 = vadd.f32 %v1381, %v1412
      %1417 = vrot.lane.b32.xlu0 %v851, 80
      %v1418 = vpop.permute.xlu0 %1417
      %1419 = vrot.lane.b32.xlu0 %v852, 80
      %v1420 = vpop.permute.xlu0 %1419
      %1421 = vrot.lane.b32.xlu0 %v853, 80
      %v1422 = vpop.permute.xlu0 %1421
      %vm1423 = vcmask 654336
      %v1424 = vsel %vm1423, %v1418, %v1420
      %v1425 = vsel %vm1423, %v1420, %v1422
      %v1428 = vmul.f32 %v651, %v1424
      %v1429 = vmul.f32 %v652, %v1425
      %1430 = vrot.lane.b32.xlu0 %v867, 80
      %v1431 = vpop.permute.xlu0 %1430
      %1432 = vrot.lane.b32.xlu0 %v868, 80
      %v1433 = vpop.permute.xlu0 %1432
      %1434 = vrot.lane.b32.xlu0 %v869, 80
      %v1435 = vpop.permute.xlu0 %1434
      %v1436 = vsel %vm1423, %v1431, %v1433
      %v1437 = vsel %vm1423, %v1433, %v1435
      %v1440 = vmul.f32 %v665, %v1436
      %v1441 = vmul.f32 %v666, %v1437
      %v1442 = vadd.f32 %v1428, %v1440
      %v1443 = vadd.f32 %v1429, %v1441
      %v1446 = vrot.slane %v1442, 5
      %v1447 = vrot.slane %v1443, 5
      %v1450 = vadd.f32 %v1415, %v1446
      %v1451 = vadd.f32 %v1416, %v1447
      %1452 = vrot.lane.b32.xlu0 %v892, 79
      %v1453 = vpop.permute.xlu0 %1452
      %1454 = vrot.lane.b32.xlu0 %v893, 79
      %v1455 = vpop.permute.xlu0 %1454
      %1456 = vrot.lane.b32.xlu0 %v894, 79
      %v1457 = vpop.permute.xlu0 %1456
      %vm1458 = vcmask 646144
      %v1459 = vsel %vm1458, %v1453, %v1455
      %v1460 = vsel %vm1458, %v1455, %v1457
      %v1463 = vmul.f32 %v651, %v1459
      %v1464 = vmul.f32 %v652, %v1460
      %1465 = vrot.lane.b32.xlu0 %v908, 79
      %v1466 = vpop.permute.xlu0 %1465
      %1467 = vrot.lane.b32.xlu0 %v909, 79
      %v1468 = vpop.permute.xlu0 %1467
      %1469 = vrot.lane.b32.xlu0 %v910, 79
      %v1470 = vpop.permute.xlu0 %1469
      %v1471 = vsel %vm1458, %v1466, %v1468
      %v1472 = vsel %vm1458, %v1468, %v1470
      %v1475 = vmul.f32 %v665, %v1471
      %v1476 = vmul.f32 %v666, %v1472
      %v1477 = vadd.f32 %v1463, %v1475
      %v1478 = vadd.f32 %v1464, %v1476
      %v1481 = vrot.slane %v1477, 6
      %v1482 = vrot.slane %v1478, 6
      %v1485 = vadd.f32 %v1450, %v1481
      %v1486 = vadd.f32 %v1451, %v1482
      %1487 = vrot.lane.b32.xlu0 %v933, 78
      %v1488 = vpop.permute.xlu0 %1487
      %1489 = vrot.lane.b32.xlu0 %v934, 78
      %v1490 = vpop.permute.xlu0 %1489
      %1491 = vrot.lane.b32.xlu0 %v935, 78
      %v1492 = vpop.permute.xlu0 %1491
      %vm1493 = vcmask 637952
      %v1494 = vsel %vm1493, %v1488, %v1490
      %v1495 = vsel %vm1493, %v1490, %v1492
      %v1498 = vmul.f32 %v651, %v1494
      %v1499 = vmul.f32 %v652, %v1495
      %1500 = vrot.lane.b32.xlu0 %v949, 78
      %v1501 = vpop.permute.xlu0 %1500
      %1502 = vrot.lane.b32.xlu0 %v950, 78
      %v1503 = vpop.permute.xlu0 %1502
      %1504 = vrot.lane.b32.xlu0 %v951, 78
      %v1505 = vpop.permute.xlu0 %1504
      %v1506 = vsel %vm1493, %v1501, %v1503
      %v1507 = vsel %vm1493, %v1503, %v1505
      %v1510 = vmul.f32 %v665, %v1506
      %v1511 = vmul.f32 %v666, %v1507
      %v1512 = vadd.f32 %v1498, %v1510
      %v1513 = vadd.f32 %v1499, %v1511
      %v1516 = vrot.slane %v1512, 7
      %v1517 = vrot.slane %v1513, 7
      %v1520 = vadd.f32 %v1485, %v1516
      %v1521 = vadd.f32 %v1486, %v1517
      %1522 = vrot.lane.b32.xlu0 %v633, 77
      %v1523 = vpop.permute.xlu0 %1522
      %1524 = vrot.lane.b32.xlu0 %v629, 77
      %v1525 = vpop.permute.xlu0 %1524
      %1526 = vrot.lane.b32.xlu0 %v634, 77
      %v1527 = vpop.permute.xlu0 %1526
      %vm1528 = vcmask 629760
      %v1529 = vsel %vm1528, %v1523, %v1525
      %v1530 = vsel %vm1528, %v1525, %v1527
      %v1533 = vmul.f32 %v653, %v1529
      %v1534 = vmul.f32 %v654, %v1530
      %1535 = vrot.lane.b32.xlu0 %v645, 77
      %v1536 = vpop.permute.xlu0 %1535
      %1537 = vrot.lane.b32.xlu0 %v641, 77
      %v1538 = vpop.permute.xlu0 %1537
      %1539 = vrot.lane.b32.xlu0 %v646, 77
      %v1540 = vpop.permute.xlu0 %1539
      %v1541 = vsel %vm1528, %v1536, %v1538
      %v1542 = vsel %vm1528, %v1538, %v1540
      %v1545 = vmul.f32 %v667, %v1541
      %v1546 = vmul.f32 %v668, %v1542
      %v1547 = vadd.f32 %v1533, %v1545
      %v1548 = vadd.f32 %v1534, %v1546
      %v1549 = vadd.f32 %v1520, %v1547
      %v1550 = vadd.f32 %v1521, %v1548
      %1551 = vrot.lane.b32.xlu0 %v685, 76
      %v1552 = vpop.permute.xlu0 %1551
      %1553 = vrot.lane.b32.xlu0 %v686, 76
      %v1554 = vpop.permute.xlu0 %1553
      %1555 = vrot.lane.b32.xlu0 %v687, 76
      %v1556 = vpop.permute.xlu0 %1555
      %vm1557 = vcmask 621568
      %v1558 = vsel %vm1557, %v1552, %v1554
      %v1559 = vsel %vm1557, %v1554, %v1556
      %v1562 = vmul.f32 %v653, %v1558
      %v1563 = vmul.f32 %v654, %v1559
      %1564 = vrot.lane.b32.xlu0 %v703, 76
      %v1565 = vpop.permute.xlu0 %1564
      %1566 = vrot.lane.b32.xlu0 %v704, 76
      %v1567 = vpop.permute.xlu0 %1566
      %1568 = vrot.lane.b32.xlu0 %v705, 76
      %v1569 = vpop.permute.xlu0 %1568
      %v1570 = vsel %vm1557, %v1565, %v1567
      %v1571 = vsel %vm1557, %v1567, %v1569
      %v1574 = vmul.f32 %v667, %v1570
      %v1575 = vmul.f32 %v668, %v1571
      %v1576 = vadd.f32 %v1562, %v1574
      %v1577 = vadd.f32 %v1563, %v1575
      %v1580 = vrot.slane %v1576, 1
      %v1581 = vrot.slane %v1577, 1
      %v1584 = vadd.f32 %v1549, %v1580
      %v1585 = vadd.f32 %v1550, %v1581
      %1586 = vrot.lane.b32.xlu0 %v728, 75
      %v1587 = vpop.permute.xlu0 %1586
      %1588 = vrot.lane.b32.xlu0 %v729, 75
      %v1589 = vpop.permute.xlu0 %1588
      %1590 = vrot.lane.b32.xlu0 %v730, 75
      %v1591 = vpop.permute.xlu0 %1590
      %vm1592 = vcmask 613376
      %v1593 = vsel %vm1592, %v1587, %v1589
      %v1594 = vsel %vm1592, %v1589, %v1591
      %v1597 = vmul.f32 %v653, %v1593
      %v1598 = vmul.f32 %v654, %v1594
      %1599 = vrot.lane.b32.xlu0 %v744, 75
      %v1600 = vpop.permute.xlu0 %1599
      %1601 = vrot.lane.b32.xlu0 %v745, 75
      %v1602 = vpop.permute.xlu0 %1601
      %1603 = vrot.lane.b32.xlu0 %v746, 75
      %v1604 = vpop.permute.xlu0 %1603
      %v1605 = vsel %vm1592, %v1600, %v1602
      %v1606 = vsel %vm1592, %v1602, %v1604
      %v1609 = vmul.f32 %v667, %v1605
      %v1610 = vmul.f32 %v668, %v1606
      %v1611 = vadd.f32 %v1597, %v1609
      %v1612 = vadd.f32 %v1598, %v1610
      %v1615 = vrot.slane %v1611, 2
      %v1616 = vrot.slane %v1612, 2
      %v1619 = vadd.f32 %v1584, %v1615
      %v1620 = vadd.f32 %v1585, %v1616
      %1621 = vrot.lane.b32.xlu0 %v769, 74
      %v1622 = vpop.permute.xlu0 %1621
      %1623 = vrot.lane.b32.xlu0 %v770, 74
      %v1624 = vpop.permute.xlu0 %1623
      %1625 = vrot.lane.b32.xlu0 %v771, 74
      %v1626 = vpop.permute.xlu0 %1625
      %vm1627 = vcmask 605184
      %v1628 = vsel %vm1627, %v1622, %v1624
      %v1629 = vsel %vm1627, %v1624, %v1626
      %v1632 = vmul.f32 %v653, %v1628
      %v1633 = vmul.f32 %v654, %v1629
      %1634 = vrot.lane.b32.xlu0 %v785, 74
      %v1635 = vpop.permute.xlu0 %1634
      %1636 = vrot.lane.b32.xlu0 %v786, 74
      %v1637 = vpop.permute.xlu0 %1636
      %1638 = vrot.lane.b32.xlu0 %v787, 74
      %v1639 = vpop.permute.xlu0 %1638
      %v1640 = vsel %vm1627, %v1635, %v1637
      %v1641 = vsel %vm1627, %v1637, %v1639
      %v1644 = vmul.f32 %v667, %v1640
      %v1645 = vmul.f32 %v668, %v1641
      %v1646 = vadd.f32 %v1632, %v1644
      %v1647 = vadd.f32 %v1633, %v1645
      %v1650 = vrot.slane %v1646, 3
      %v1651 = vrot.slane %v1647, 3
      %v1654 = vadd.f32 %v1619, %v1650
      %v1655 = vadd.f32 %v1620, %v1651
      %1656 = vrot.lane.b32.xlu0 %v810, 64
      %v1657 = vpop.permute.xlu0 %1656
      %1658 = vrot.lane.b32.xlu0 %v811, 64
      %v1659 = vpop.permute.xlu0 %1658
      %1660 = vrot.lane.b32.xlu0 %v812, 64
      %v1661 = vpop.permute.xlu0 %1660
      %vm1662 = vcmask 523264
      %v1663 = vsel %vm1662, %v1657, %v1659
      %v1664 = vsel %vm1662, %v1659, %v1661
      %v1667 = vmul.f32 %v653, %v1663
      %v1668 = vmul.f32 %v654, %v1664
      %1669 = vrot.lane.b32.xlu0 %v826, 64
      %v1670 = vpop.permute.xlu0 %1669
      %1671 = vrot.lane.b32.xlu0 %v827, 64
      %v1672 = vpop.permute.xlu0 %1671
      %1673 = vrot.lane.b32.xlu0 %v828, 64
      %v1674 = vpop.permute.xlu0 %1673
      %v1675 = vsel %vm1662, %v1670, %v1672
      %v1676 = vsel %vm1662, %v1672, %v1674
      %v1679 = vmul.f32 %v667, %v1675
      %v1680 = vmul.f32 %v668, %v1676
      %v1681 = vadd.f32 %v1667, %v1679
      %v1682 = vadd.f32 %v1668, %v1680
      %v1685 = vrot.slane %v1681, 4
      %v1686 = vrot.slane %v1682, 4
      %v1689 = vadd.f32 %v1654, %v1685
      %v1690 = vadd.f32 %v1655, %v1686
      %1691 = vrot.lane.b32.xlu0 %v851, 63
      %v1692 = vpop.permute.xlu0 %1691
      %1693 = vrot.lane.b32.xlu0 %v852, 63
      %v1694 = vpop.permute.xlu0 %1693
      %1695 = vrot.lane.b32.xlu0 %v853, 63
      %v1696 = vpop.permute.xlu0 %1695
      %vm1697 = vcmask 515072
      %v1698 = vsel %vm1697, %v1692, %v1694
      %v1699 = vsel %vm1697, %v1694, %v1696
      %v1702 = vmul.f32 %v653, %v1698
      %v1703 = vmul.f32 %v654, %v1699
      %1704 = vrot.lane.b32.xlu0 %v867, 63
      %v1705 = vpop.permute.xlu0 %1704
      %1706 = vrot.lane.b32.xlu0 %v868, 63
      %v1707 = vpop.permute.xlu0 %1706
      %1708 = vrot.lane.b32.xlu0 %v869, 63
      %v1709 = vpop.permute.xlu0 %1708
      %v1710 = vsel %vm1697, %v1705, %v1707
      %v1711 = vsel %vm1697, %v1707, %v1709
      %v1714 = vmul.f32 %v667, %v1710
      %v1715 = vmul.f32 %v668, %v1711
      %v1716 = vadd.f32 %v1702, %v1714
      %v1717 = vadd.f32 %v1703, %v1715
      %v1720 = vrot.slane %v1716, 5
      %v1721 = vrot.slane %v1717, 5
      %v1724 = vadd.f32 %v1689, %v1720
      %v1725 = vadd.f32 %v1690, %v1721
      %1726 = vrot.lane.b32.xlu0 %v892, 62
      %v1727 = vpop.permute.xlu0 %1726
      %1728 = vrot.lane.b32.xlu0 %v893, 62
      %v1729 = vpop.permute.xlu0 %1728
      %1730 = vrot.lane.b32.xlu0 %v894, 62
      %v1731 = vpop.permute.xlu0 %1730
      %vm1732 = vcmask 506880
      %v1733 = vsel %vm1732, %v1727, %v1729
      %v1734 = vsel %vm1732, %v1729, %v1731
      %v1737 = vmul.f32 %v653, %v1733
      %v1738 = vmul.f32 %v654, %v1734
      %1739 = vrot.lane.b32.xlu0 %v908, 62
      %v1740 = vpop.permute.xlu0 %1739
      %1741 = vrot.lane.b32.xlu0 %v909, 62
      %v1742 = vpop.permute.xlu0 %1741
      %1743 = vrot.lane.b32.xlu0 %v910, 62
      %v1744 = vpop.permute.xlu0 %1743
      %v1745 = vsel %vm1732, %v1740, %v1742
      %v1746 = vsel %vm1732, %v1742, %v1744
      %v1749 = vmul.f32 %v667, %v1745
      %v1750 = vmul.f32 %v668, %v1746
      %v1751 = vadd.f32 %v1737, %v1749
      %v1752 = vadd.f32 %v1738, %v1750
      %v1755 = vrot.slane %v1751, 6
      %v1756 = vrot.slane %v1752, 6
      %v1759 = vadd.f32 %v1724, %v1755
      %v1760 = vadd.f32 %v1725, %v1756
      %1761 = vrot.lane.b32.xlu0 %v933, 61
      %v1762 = vpop.permute.xlu0 %1761
      %1763 = vrot.lane.b32.xlu0 %v934, 61
      %v1764 = vpop.permute.xlu0 %1763
      %1765 = vrot.lane.b32.xlu0 %v935, 61
      %v1766 = vpop.permute.xlu0 %1765
      %vm1767 = vcmask 498688
      %v1768 = vsel %vm1767, %v1762, %v1764
      %v1769 = vsel %vm1767, %v1764, %v1766
      %v1772 = vmul.f32 %v653, %v1768
      %v1773 = vmul.f32 %v654, %v1769
      %1774 = vrot.lane.b32.xlu0 %v949, 61
      %v1775 = vpop.permute.xlu0 %1774
      %1776 = vrot.lane.b32.xlu0 %v950, 61
      %v1777 = vpop.permute.xlu0 %1776
      %1778 = vrot.lane.b32.xlu0 %v951, 61
      %v1779 = vpop.permute.xlu0 %1778
      %v1780 = vsel %vm1767, %v1775, %v1777
      %v1781 = vsel %vm1767, %v1777, %v1779
      %v1784 = vmul.f32 %v667, %v1780
      %v1785 = vmul.f32 %v668, %v1781
      %v1786 = vadd.f32 %v1772, %v1784
      %v1787 = vadd.f32 %v1773, %v1785
      %v1790 = vrot.slane %v1786, 7
      %v1791 = vrot.slane %v1787, 7
      %v1794 = vadd.f32 %v1759, %v1790
      %v1795 = vadd.f32 %v1760, %v1791
      %1796 = vrot.lane.b32.xlu0 %v633, 60
      %v1797 = vpop.permute.xlu0 %1796
      %1798 = vrot.lane.b32.xlu0 %v629, 60
      %v1799 = vpop.permute.xlu0 %1798
      %1800 = vrot.lane.b32.xlu0 %v634, 60
      %v1801 = vpop.permute.xlu0 %1800
      %vm1802 = vcmask 490496
      %v1803 = vsel %vm1802, %v1797, %v1799
      %v1804 = vsel %vm1802, %v1799, %v1801
      %v1807 = vmul.f32 %v655, %v1803
      %v1808 = vmul.f32 %v656, %v1804
      %1809 = vrot.lane.b32.xlu0 %v645, 60
      %v1810 = vpop.permute.xlu0 %1809
      %1811 = vrot.lane.b32.xlu0 %v641, 60
      %v1812 = vpop.permute.xlu0 %1811
      %1813 = vrot.lane.b32.xlu0 %v646, 60
      %v1814 = vpop.permute.xlu0 %1813
      %v1815 = vsel %vm1802, %v1810, %v1812
      %v1816 = vsel %vm1802, %v1812, %v1814
      %v1819 = vmul.f32 %v669, %v1815
      %v1820 = vmul.f32 %v670, %v1816
      %v1821 = vadd.f32 %v1807, %v1819
      %v1822 = vadd.f32 %v1808, %v1820
      %v1823 = vadd.f32 %v1794, %v1821
      %v1824 = vadd.f32 %v1795, %v1822
      %1825 = vrot.lane.b32.xlu0 %v685, 59
      %v1826 = vpop.permute.xlu0 %1825
      %1827 = vrot.lane.b32.xlu0 %v686, 59
      %v1828 = vpop.permute.xlu0 %1827
      %1829 = vrot.lane.b32.xlu0 %v687, 59
      %v1830 = vpop.permute.xlu0 %1829
      %vm1831 = vcmask 482304
      %v1832 = vsel %vm1831, %v1826, %v1828
      %v1833 = vsel %vm1831, %v1828, %v1830
      %v1836 = vmul.f32 %v655, %v1832
      %v1837 = vmul.f32 %v656, %v1833
      %1838 = vrot.lane.b32.xlu0 %v703, 59
      %v1839 = vpop.permute.xlu0 %1838
      %1840 = vrot.lane.b32.xlu0 %v704, 59
      %v1841 = vpop.permute.xlu0 %1840
      %1842 = vrot.lane.b32.xlu0 %v705, 59
      %v1843 = vpop.permute.xlu0 %1842
      %v1844 = vsel %vm1831, %v1839, %v1841
      %v1845 = vsel %vm1831, %v1841, %v1843
      %v1848 = vmul.f32 %v669, %v1844
      %v1849 = vmul.f32 %v670, %v1845
      %v1850 = vadd.f32 %v1836, %v1848
      %v1851 = vadd.f32 %v1837, %v1849
      %v1854 = vrot.slane %v1850, 1
      %v1855 = vrot.slane %v1851, 1
      %v1858 = vadd.f32 %v1823, %v1854
      %v1859 = vadd.f32 %v1824, %v1855
      %1860 = vrot.lane.b32.xlu0 %v728, 58
      %v1861 = vpop.permute.xlu0 %1860
      %1862 = vrot.lane.b32.xlu0 %v729, 58
      %v1863 = vpop.permute.xlu0 %1862
      %1864 = vrot.lane.b32.xlu0 %v730, 58
      %v1865 = vpop.permute.xlu0 %1864
      %vm1866 = vcmask 474112
      %v1867 = vsel %vm1866, %v1861, %v1863
      %v1868 = vsel %vm1866, %v1863, %v1865
      %v1871 = vmul.f32 %v655, %v1867
      %v1872 = vmul.f32 %v656, %v1868
      %1873 = vrot.lane.b32.xlu0 %v744, 58
      %v1874 = vpop.permute.xlu0 %1873
      %1875 = vrot.lane.b32.xlu0 %v745, 58
      %v1876 = vpop.permute.xlu0 %1875
      %1877 = vrot.lane.b32.xlu0 %v746, 58
      %v1878 = vpop.permute.xlu0 %1877
      %v1879 = vsel %vm1866, %v1874, %v1876
      %v1880 = vsel %vm1866, %v1876, %v1878
      %v1883 = vmul.f32 %v669, %v1879
      %v1884 = vmul.f32 %v670, %v1880
      %v1885 = vadd.f32 %v1871, %v1883
      %v1886 = vadd.f32 %v1872, %v1884
      %v1889 = vrot.slane %v1885, 2
      %v1890 = vrot.slane %v1886, 2
      %v1893 = vadd.f32 %v1858, %v1889
      %v1894 = vadd.f32 %v1859, %v1890
      %1895 = vrot.lane.b32.xlu0 %v769, 48
      %v1896 = vpop.permute.xlu0 %1895
      %1897 = vrot.lane.b32.xlu0 %v770, 48
      %v1898 = vpop.permute.xlu0 %1897
      %1899 = vrot.lane.b32.xlu0 %v771, 48
      %v1900 = vpop.permute.xlu0 %1899
      %vm1901 = vcmask 392192
      %v1902 = vsel %vm1901, %v1896, %v1898
      %v1903 = vsel %vm1901, %v1898, %v1900
      %v1906 = vmul.f32 %v655, %v1902
      %v1907 = vmul.f32 %v656, %v1903
      %1908 = vrot.lane.b32.xlu0 %v785, 48
      %v1909 = vpop.permute.xlu0 %1908
      %1910 = vrot.lane.b32.xlu0 %v786, 48
      %v1911 = vpop.permute.xlu0 %1910
      %1912 = vrot.lane.b32.xlu0 %v787, 48
      %v1913 = vpop.permute.xlu0 %1912
      %v1914 = vsel %vm1901, %v1909, %v1911
      %v1915 = vsel %vm1901, %v1911, %v1913
      %v1918 = vmul.f32 %v669, %v1914
      %v1919 = vmul.f32 %v670, %v1915
      %v1920 = vadd.f32 %v1906, %v1918
      %v1921 = vadd.f32 %v1907, %v1919
      %v1924 = vrot.slane %v1920, 3
      %v1925 = vrot.slane %v1921, 3
      %v1928 = vadd.f32 %v1893, %v1924
      %v1929 = vadd.f32 %v1894, %v1925
      %1930 = vrot.lane.b32.xlu0 %v810, 47
      %v1931 = vpop.permute.xlu0 %1930
      %1932 = vrot.lane.b32.xlu0 %v811, 47
      %v1933 = vpop.permute.xlu0 %1932
      %1934 = vrot.lane.b32.xlu0 %v812, 47
      %v1935 = vpop.permute.xlu0 %1934
      %vm1936 = vcmask 384000
      %v1937 = vsel %vm1936, %v1931, %v1933
      %v1938 = vsel %vm1936, %v1933, %v1935
      %v1941 = vmul.f32 %v655, %v1937
      %v1942 = vmul.f32 %v656, %v1938
      %1943 = vrot.lane.b32.xlu0 %v826, 47
      %v1944 = vpop.permute.xlu0 %1943
      %1945 = vrot.lane.b32.xlu0 %v827, 47
      %v1946 = vpop.permute.xlu0 %1945
      %1947 = vrot.lane.b32.xlu0 %v828, 47
      %v1948 = vpop.permute.xlu0 %1947
      %v1949 = vsel %vm1936, %v1944, %v1946
      %v1950 = vsel %vm1936, %v1946, %v1948
      %v1953 = vmul.f32 %v669, %v1949
      %v1954 = vmul.f32 %v670, %v1950
      %v1955 = vadd.f32 %v1941, %v1953
      %v1956 = vadd.f32 %v1942, %v1954
      %v1959 = vrot.slane %v1955, 4
      %v1960 = vrot.slane %v1956, 4
      %v1963 = vadd.f32 %v1928, %v1959
      %v1964 = vadd.f32 %v1929, %v1960
      %1965 = vrot.lane.b32.xlu0 %v851, 46
      %v1966 = vpop.permute.xlu0 %1965
      %1967 = vrot.lane.b32.xlu0 %v852, 46
      %v1968 = vpop.permute.xlu0 %1967
      %1969 = vrot.lane.b32.xlu0 %v853, 46
      %v1970 = vpop.permute.xlu0 %1969
      %vm1971 = vcmask 375808
      %v1972 = vsel %vm1971, %v1966, %v1968
      %v1973 = vsel %vm1971, %v1968, %v1970
      %v1976 = vmul.f32 %v655, %v1972
      %v1977 = vmul.f32 %v656, %v1973
      %1978 = vrot.lane.b32.xlu0 %v867, 46
      %v1979 = vpop.permute.xlu0 %1978
      %1980 = vrot.lane.b32.xlu0 %v868, 46
      %v1981 = vpop.permute.xlu0 %1980
      %1982 = vrot.lane.b32.xlu0 %v869, 46
      %v1983 = vpop.permute.xlu0 %1982
      %v1984 = vsel %vm1971, %v1979, %v1981
      %v1985 = vsel %vm1971, %v1981, %v1983
      %v1988 = vmul.f32 %v669, %v1984
      %v1989 = vmul.f32 %v670, %v1985
      %v1990 = vadd.f32 %v1976, %v1988
      %v1991 = vadd.f32 %v1977, %v1989
      %v1994 = vrot.slane %v1990, 5
      %v1995 = vrot.slane %v1991, 5
      %v1998 = vadd.f32 %v1963, %v1994
      %v1999 = vadd.f32 %v1964, %v1995
      %2000 = vrot.lane.b32.xlu0 %v892, 45
      %v2001 = vpop.permute.xlu0 %2000
      %2002 = vrot.lane.b32.xlu0 %v893, 45
      %v2003 = vpop.permute.xlu0 %2002
      %2004 = vrot.lane.b32.xlu0 %v894, 45
      %v2005 = vpop.permute.xlu0 %2004
      %vm2006 = vcmask 367616
      %v2007 = vsel %vm2006, %v2001, %v2003
      %v2008 = vsel %vm2006, %v2003, %v2005
      %v2011 = vmul.f32 %v655, %v2007
      %v2012 = vmul.f32 %v656, %v2008
      %2013 = vrot.lane.b32.xlu0 %v908, 45
      %v2014 = vpop.permute.xlu0 %2013
      %2015 = vrot.lane.b32.xlu0 %v909, 45
      %v2016 = vpop.permute.xlu0 %2015
      %2017 = vrot.lane.b32.xlu0 %v910, 45
      %v2018 = vpop.permute.xlu0 %2017
      %v2019 = vsel %vm2006, %v2014, %v2016
      %v2020 = vsel %vm2006, %v2016, %v2018
      %v2023 = vmul.f32 %v669, %v2019
      %v2024 = vmul.f32 %v670, %v2020
      %v2025 = vadd.f32 %v2011, %v2023
      %v2026 = vadd.f32 %v2012, %v2024
      %v2029 = vrot.slane %v2025, 6
      %v2030 = vrot.slane %v2026, 6
      %v2033 = vadd.f32 %v1998, %v2029
      %v2034 = vadd.f32 %v1999, %v2030
      %2035 = vrot.lane.b32.xlu0 %v933, 44
      %v2036 = vpop.permute.xlu0 %2035
      %2037 = vrot.lane.b32.xlu0 %v934, 44
      %v2038 = vpop.permute.xlu0 %2037
      %2039 = vrot.lane.b32.xlu0 %v935, 44
      %v2040 = vpop.permute.xlu0 %2039
      %vm2041 = vcmask 359424
      %v2042 = vsel %vm2041, %v2036, %v2038
      %v2043 = vsel %vm2041, %v2038, %v2040
      %v2046 = vmul.f32 %v655, %v2042
      %v2047 = vmul.f32 %v656, %v2043
      %2048 = vrot.lane.b32.xlu0 %v949, 44
      %v2049 = vpop.permute.xlu0 %2048
      %2050 = vrot.lane.b32.xlu0 %v950, 44
      %v2051 = vpop.permute.xlu0 %2050
      %2052 = vrot.lane.b32.xlu0 %v951, 44
      %v2053 = vpop.permute.xlu0 %2052
      %v2054 = vsel %vm2041, %v2049, %v2051
      %v2055 = vsel %vm2041, %v2051, %v2053
      %v2058 = vmul.f32 %v669, %v2054
      %v2059 = vmul.f32 %v670, %v2055
      %v2060 = vadd.f32 %v2046, %v2058
      %v2061 = vadd.f32 %v2047, %v2059
      %v2064 = vrot.slane %v2060, 7
      %v2065 = vrot.slane %v2061, 7
      %v2068 = vadd.f32 %v2033, %v2064
      %v2069 = vadd.f32 %v2034, %v2065
      %2070 = vrot.lane.b32.xlu0 %v633, 43
      %v2071 = vpop.permute.xlu0 %2070
      %2072 = vrot.lane.b32.xlu0 %v629, 43
      %v2073 = vpop.permute.xlu0 %2072
      %2074 = vrot.lane.b32.xlu0 %v634, 43
      %v2075 = vpop.permute.xlu0 %2074
      %vm2076 = vcmask 351232
      %v2077 = vsel %vm2076, %v2071, %v2073
      %v2078 = vsel %vm2076, %v2073, %v2075
      %v2081 = vmul.f32 %v657, %v2077
      %v2082 = vmul.f32 %v658, %v2078
      %2083 = vrot.lane.b32.xlu0 %v645, 43
      %v2084 = vpop.permute.xlu0 %2083
      %2085 = vrot.lane.b32.xlu0 %v641, 43
      %v2086 = vpop.permute.xlu0 %2085
      %2087 = vrot.lane.b32.xlu0 %v646, 43
      %v2088 = vpop.permute.xlu0 %2087
      %v2089 = vsel %vm2076, %v2084, %v2086
      %v2090 = vsel %vm2076, %v2086, %v2088
      %v2093 = vmul.f32 %v671, %v2089
      %v2094 = vmul.f32 %v672, %v2090
      %v2095 = vadd.f32 %v2081, %v2093
      %v2096 = vadd.f32 %v2082, %v2094
      %v2097 = vadd.f32 %v2068, %v2095
      %v2098 = vadd.f32 %v2069, %v2096
      %2099 = vrot.lane.b32.xlu0 %v685, 42
      %v2100 = vpop.permute.xlu0 %2099
      %2101 = vrot.lane.b32.xlu0 %v686, 42
      %v2102 = vpop.permute.xlu0 %2101
      %2103 = vrot.lane.b32.xlu0 %v687, 42
      %v2104 = vpop.permute.xlu0 %2103
      %vm2105 = vcmask 343040
      %v2106 = vsel %vm2105, %v2100, %v2102
      %v2107 = vsel %vm2105, %v2102, %v2104
      %v2110 = vmul.f32 %v657, %v2106
      %v2111 = vmul.f32 %v658, %v2107
      %2112 = vrot.lane.b32.xlu0 %v703, 42
      %v2113 = vpop.permute.xlu0 %2112
      %2114 = vrot.lane.b32.xlu0 %v704, 42
      %v2115 = vpop.permute.xlu0 %2114
      %2116 = vrot.lane.b32.xlu0 %v705, 42
      %v2117 = vpop.permute.xlu0 %2116
      %v2118 = vsel %vm2105, %v2113, %v2115
      %v2119 = vsel %vm2105, %v2115, %v2117
      %v2122 = vmul.f32 %v671, %v2118
      %v2123 = vmul.f32 %v672, %v2119
      %v2124 = vadd.f32 %v2110, %v2122
      %v2125 = vadd.f32 %v2111, %v2123
      %v2128 = vrot.slane %v2124, 1
      %v2129 = vrot.slane %v2125, 1
      %v2132 = vadd.f32 %v2097, %v2128
      %v2133 = vadd.f32 %v2098, %v2129
      %2134 = vrot.lane.b32.xlu0 %v728, 32
      %v2135 = vpop.permute.xlu0 %2134
      %2136 = vrot.lane.b32.xlu0 %v729, 32
      %v2137 = vpop.permute.xlu0 %2136
      %2138 = vrot.lane.b32.xlu0 %v730, 32
      %v2139 = vpop.permute.xlu0 %2138
      %v2140 = vsel %vm385, %v2135, %v2137
      %v2141 = vsel %vm385, %v2137, %v2139
      %v2144 = vmul.f32 %v657, %v2140
      %v2145 = vmul.f32 %v658, %v2141
      %2146 = vrot.lane.b32.xlu0 %v744, 32
      %v2147 = vpop.permute.xlu0 %2146
      %2148 = vrot.lane.b32.xlu0 %v745, 32
      %v2149 = vpop.permute.xlu0 %2148
      %2150 = vrot.lane.b32.xlu0 %v746, 32
      %v2151 = vpop.permute.xlu0 %2150
      %v2152 = vsel %vm385, %v2147, %v2149
      %v2153 = vsel %vm385, %v2149, %v2151
      %v2156 = vmul.f32 %v671, %v2152
      %v2157 = vmul.f32 %v672, %v2153
      %v2158 = vadd.f32 %v2144, %v2156
      %v2159 = vadd.f32 %v2145, %v2157
      %v2162 = vrot.slane %v2158, 2
      %v2163 = vrot.slane %v2159, 2
      %v2166 = vadd.f32 %v2132, %v2162
      %v2167 = vadd.f32 %v2133, %v2163
      %2168 = vrot.lane.b32.xlu0 %v769, 31
      %v2169 = vpop.permute.xlu0 %2168
      %2170 = vrot.lane.b32.xlu0 %v770, 31
      %v2171 = vpop.permute.xlu0 %2170
      %2172 = vrot.lane.b32.xlu0 %v771, 31
      %v2173 = vpop.permute.xlu0 %2172
      %vm2174 = vcmask 252928
      %v2175 = vsel %vm2174, %v2169, %v2171
      %v2176 = vsel %vm2174, %v2171, %v2173
      %v2179 = vmul.f32 %v657, %v2175
      %v2180 = vmul.f32 %v658, %v2176
      %2181 = vrot.lane.b32.xlu0 %v785, 31
      %v2182 = vpop.permute.xlu0 %2181
      %2183 = vrot.lane.b32.xlu0 %v786, 31
      %v2184 = vpop.permute.xlu0 %2183
      %2185 = vrot.lane.b32.xlu0 %v787, 31
      %v2186 = vpop.permute.xlu0 %2185
      %v2187 = vsel %vm2174, %v2182, %v2184
      %v2188 = vsel %vm2174, %v2184, %v2186
      %v2191 = vmul.f32 %v671, %v2187
      %v2192 = vmul.f32 %v672, %v2188
      %v2193 = vadd.f32 %v2179, %v2191
      %v2194 = vadd.f32 %v2180, %v2192
      %v2197 = vrot.slane %v2193, 3
      %v2198 = vrot.slane %v2194, 3
      %v2201 = vadd.f32 %v2166, %v2197
      %v2202 = vadd.f32 %v2167, %v2198
      %2203 = vrot.lane.b32.xlu0 %v810, 30
      %v2204 = vpop.permute.xlu0 %2203
      %2205 = vrot.lane.b32.xlu0 %v811, 30
      %v2206 = vpop.permute.xlu0 %2205
      %2207 = vrot.lane.b32.xlu0 %v812, 30
      %v2208 = vpop.permute.xlu0 %2207
      %vm2209 = vcmask 244736
      %v2210 = vsel %vm2209, %v2204, %v2206
      %v2211 = vsel %vm2209, %v2206, %v2208
      %v2214 = vmul.f32 %v657, %v2210
      %v2215 = vmul.f32 %v658, %v2211
      %2216 = vrot.lane.b32.xlu0 %v826, 30
      %v2217 = vpop.permute.xlu0 %2216
      %2218 = vrot.lane.b32.xlu0 %v827, 30
      %v2219 = vpop.permute.xlu0 %2218
      %2220 = vrot.lane.b32.xlu0 %v828, 30
      %v2221 = vpop.permute.xlu0 %2220
      %v2222 = vsel %vm2209, %v2217, %v2219
      %v2223 = vsel %vm2209, %v2219, %v2221
      %v2226 = vmul.f32 %v671, %v2222
      %v2227 = vmul.f32 %v672, %v2223
      %v2228 = vadd.f32 %v2214, %v2226
      %v2229 = vadd.f32 %v2215, %v2227
      %v2232 = vrot.slane %v2228, 4
      %v2233 = vrot.slane %v2229, 4
      %v2236 = vadd.f32 %v2201, %v2232
      %v2237 = vadd.f32 %v2202, %v2233
      %2238 = vrot.lane.b32.xlu0 %v851, 29
      %v2239 = vpop.permute.xlu0 %2238
      %2240 = vrot.lane.b32.xlu0 %v852, 29
      %v2241 = vpop.permute.xlu0 %2240
      %2242 = vrot.lane.b32.xlu0 %v853, 29
      %v2243 = vpop.permute.xlu0 %2242
      %vm2244 = vcmask 236544
      %v2245 = vsel %vm2244, %v2239, %v2241
      %v2246 = vsel %vm2244, %v2241, %v2243
      %v2249 = vmul.f32 %v657, %v2245
      %v2250 = vmul.f32 %v658, %v2246
      %2251 = vrot.lane.b32.xlu0 %v867, 29
      %v2252 = vpop.permute.xlu0 %2251
      %2253 = vrot.lane.b32.xlu0 %v868, 29
      %v2254 = vpop.permute.xlu0 %2253
      %2255 = vrot.lane.b32.xlu0 %v869, 29
      %v2256 = vpop.permute.xlu0 %2255
      %v2257 = vsel %vm2244, %v2252, %v2254
      %v2258 = vsel %vm2244, %v2254, %v2256
      %v2261 = vmul.f32 %v671, %v2257
      %v2262 = vmul.f32 %v672, %v2258
      %v2263 = vadd.f32 %v2249, %v2261
      %v2264 = vadd.f32 %v2250, %v2262
      %v2267 = vrot.slane %v2263, 5
      %v2268 = vrot.slane %v2264, 5
      %v2271 = vadd.f32 %v2236, %v2267
      %v2272 = vadd.f32 %v2237, %v2268
      %2273 = vrot.lane.b32.xlu0 %v892, 28
      %v2274 = vpop.permute.xlu0 %2273
      %2275 = vrot.lane.b32.xlu0 %v893, 28
      %v2276 = vpop.permute.xlu0 %2275
      %2277 = vrot.lane.b32.xlu0 %v894, 28
      %v2278 = vpop.permute.xlu0 %2277
      %vm2279 = vcmask 228352
      %v2280 = vsel %vm2279, %v2274, %v2276
      %v2281 = vsel %vm2279, %v2276, %v2278
      %v2284 = vmul.f32 %v657, %v2280
      %v2285 = vmul.f32 %v658, %v2281
      %2286 = vrot.lane.b32.xlu0 %v908, 28
      %v2287 = vpop.permute.xlu0 %2286
      %2288 = vrot.lane.b32.xlu0 %v909, 28
      %v2289 = vpop.permute.xlu0 %2288
      %2290 = vrot.lane.b32.xlu0 %v910, 28
      %v2291 = vpop.permute.xlu0 %2290
      %v2292 = vsel %vm2279, %v2287, %v2289
      %v2293 = vsel %vm2279, %v2289, %v2291
      %v2296 = vmul.f32 %v671, %v2292
      %v2297 = vmul.f32 %v672, %v2293
      %v2298 = vadd.f32 %v2284, %v2296
      %v2299 = vadd.f32 %v2285, %v2297
      %v2302 = vrot.slane %v2298, 6
      %v2303 = vrot.slane %v2299, 6
      %v2306 = vadd.f32 %v2271, %v2302
      %v2307 = vadd.f32 %v2272, %v2303
      %2308 = vrot.lane.b32.xlu0 %v933, 27
      %v2309 = vpop.permute.xlu0 %2308
      %2310 = vrot.lane.b32.xlu0 %v934, 27
      %v2311 = vpop.permute.xlu0 %2310
      %2312 = vrot.lane.b32.xlu0 %v935, 27
      %v2313 = vpop.permute.xlu0 %2312
      %vm2314 = vcmask 220160
      %v2315 = vsel %vm2314, %v2309, %v2311
      %v2316 = vsel %vm2314, %v2311, %v2313
      %v2319 = vmul.f32 %v657, %v2315
      %v2320 = vmul.f32 %v658, %v2316
      %2321 = vrot.lane.b32.xlu0 %v949, 27
      %v2322 = vpop.permute.xlu0 %2321
      %2323 = vrot.lane.b32.xlu0 %v950, 27
      %v2324 = vpop.permute.xlu0 %2323
      %2325 = vrot.lane.b32.xlu0 %v951, 27
      %v2326 = vpop.permute.xlu0 %2325
      %v2327 = vsel %vm2314, %v2322, %v2324
      %v2328 = vsel %vm2314, %v2324, %v2326
      %v2331 = vmul.f32 %v671, %v2327
      %v2332 = vmul.f32 %v672, %v2328
      %v2333 = vadd.f32 %v2319, %v2331
      %v2334 = vadd.f32 %v2320, %v2332
      %v2337 = vrot.slane %v2333, 7
      %v2338 = vrot.slane %v2334, 7
      %v2341 = vadd.f32 %v2306, %v2337
      %v2342 = vadd.f32 %v2307, %v2338
      %2343 = vrot.lane.b32.xlu0 %v633, 26
      %v2344 = vpop.permute.xlu0 %2343
      %2345 = vrot.lane.b32.xlu0 %v629, 26
      %v2346 = vpop.permute.xlu0 %2345
      %2347 = vrot.lane.b32.xlu0 %v634, 26
      %v2348 = vpop.permute.xlu0 %2347
      %vm2349 = vcmask 211968
      %v2350 = vsel %vm2349, %v2344, %v2346
      %v2351 = vsel %vm2349, %v2346, %v2348
      %v2354 = vmul.f32 %v659, %v2350
      %v2355 = vmul.f32 %v660, %v2351
      %2356 = vrot.lane.b32.xlu0 %v645, 26
      %v2357 = vpop.permute.xlu0 %2356
      %2358 = vrot.lane.b32.xlu0 %v641, 26
      %v2359 = vpop.permute.xlu0 %2358
      %2360 = vrot.lane.b32.xlu0 %v646, 26
      %v2361 = vpop.permute.xlu0 %2360
      %v2362 = vsel %vm2349, %v2357, %v2359
      %v2363 = vsel %vm2349, %v2359, %v2361
      %v2366 = vmul.f32 %v673, %v2362
      %v2367 = vmul.f32 %v674, %v2363
      %v2368 = vadd.f32 %v2354, %v2366
      %v2369 = vadd.f32 %v2355, %v2367
      %v2370 = vadd.f32 %v2341, %v2368
      %v2371 = vadd.f32 %v2342, %v2369
      %v2372 = vxor.u32 %v2370, 2147483648
      %v2373 = vxor.u32 %v2371, 2147483648
      %v2374 = vmul.f32 %v2372, 1.442695
      %v2375 = vpow.pop %v2374
      %v2376 = vmul.f32 %v2373, 1.442695
      %v2377 = vpow.pop %v2376
      %v2378 = vadd.f32 %v2375, 1.0
      %v2379 = vadd.f32 %v2377, 1.0
      %v2380 = vrcp.pop %v2378
      %v2381 = vmul.f32 1.0, %v2380
      %v2382 = vrcp.pop %v2379
      %v2383 = vmul.f32 1.0, %v2382
      %v2384 = vlaneseq
      %v2385 = vshrl.u32 %v2384, 7
      %v2386 = vsub.s32 0, %v2385
      %v2387 = vrot.slane %v2381, %v2386
      %v2388 = vlaneseq
      %v2389 = vshrl.u32 %v2388, 7
      %v2390 = vsub.s32 0, %v2389
      %v2391 = vrot.slane %v2383, %v2390
      %v2392 = vmul.f32 %v279, %v2387
      %v2393 = vmul.f32 %v280, %v2391
      %v2394 = vmul.f32 %v281, %v2387
      %v2395 = vmul.f32 %v282, %v2391
      %v2396 = vmul.f32 %v283, %v2387
      %v2397 = vmul.f32 %v284, %v2391
      %v2398 = vmul.f32 %v285, %v2387
      %v2399 = vmul.f32 %v286, %v2391
      %v2400 = vadd.f32 %v575, %v2392
      %v2401 = vadd.f32 %v576, %v2393
      %v2402 = vadd.f32 %v577, %v2394
      %v2403 = vadd.f32 %v578, %v2395
      %v2404 = vadd.f32 %v579, %v2396
      %v2405 = vadd.f32 %v580, %v2397
      %v2406 = vadd.f32 %v581, %v2398
      %v2407 = vadd.f32 %v582, %v2399
      %2408 = vst [vmem:[%s278] sm:$0xff] %v2400
      %2409 = vst [vmem:[%s278 + $0x8] sm:$0xff] %v2401
      %2410 = vst [vmem:[%s278 + $0x10] sm:$0xff] %v2402
      %2411 = vst [vmem:[%s278 + $0x18] sm:$0xff] %v2403
      %2412 = vst [vmem:[%s278 + $0x20] sm:$0xff] %v2404
      %2413 = vst [vmem:[%s278 + $0x28] sm:$0xff] %v2405
      %2414 = vst [vmem:[%s278 + $0x30] sm:$0xff] %v2406
      %2415 = vst [vmem:[%s278 + $0x38] sm:$0xff] %v2407
      %p2416 = scmp.lt.s32.totalorder %s18, 1
      %s2417 = scalar_select %p2416, %s18, 1
      %s2418 = smul.addr %s2417, 8
      %s2419 = smul.addr %s2418, 8
      %s2420 = scalar_lea.vmem %s7, %s2419
      // Predicated region
      $region49: #{cbam_forward.1} parent=47 // pred_check
        %p2421 = pneg %p188
      $region50: #{cbam_forward.1} parent=47 // pred_check_branch
        %2423 = sbr.rel (%p2421) target = $region52
      $region51: #{cbam_forward.1} parent=47 // pred_region
        _
      $region52: #{cbam_forward.1} parent=47 // pred_fallthru
        _
    $region48: #{cbam_forward.1} parent=5 // pred_fallthru
      _
    %p2424 = scmp.le.s32.totalorder 2, %s13
    // Predicated region
    $region53: #{cbam_forward.1} parent=5 // pred_check
      %p2425 = pneg %p2424
    $region54: #{cbam_forward.1} parent=5 // pred_check_branch
      %2427 = sbr.rel (%p2425) target = $region56
    $region55: #{cbam_forward.1} parent=5 // pred_region
      %s2428 = ssub.s32 %s13, 2
      // Predicated region
      $region57: #{cbam_forward.1} parent=55 // pred_check
        %p2429 = pneg %p194
      $region58: #{cbam_forward.1} parent=55 // pred_check_branch
        %2431 = sbr.rel (%p2429) target = $region60
      $region59: #{cbam_forward.1} parent=55 // pred_region
        %p2432 = scmp.lt.s32.totalorder %s19, 1
        %s2433 = scalar_select %p2432, %s19, 1
        %s2434 = smul.addr %s2433, 8
        %s2435 = smul.addr %s2434, 8
        %s2436 = scalar_lea.vmem %s7, %s2435
      $region60: #{cbam_forward.1} parent=55 // pred_fallthru
        _
    $region56: #{cbam_forward.1} parent=5 // pred_fallthru
      _
  $region6: #{cbam_forward.1} parent=0 // loop_footer
    %s17 = sadd.s32 1, %s13
  $region7: #{cbam_forward.1} parent=0 // loop_footer_branch
    %12 = sbr.rel target = $region3
  $region8: #{cbam_forward.1} parent=0 // loop_exit
    _

</llo_original>
